<compile_context>
chip_gen: v5e
topology: v5e:2x2
jax: 0.10.0
libtpu: 0.0.40
codegen_flags: <defaults>
</compile_context>

<pallas_src>
import functools

import jax
import jax.numpy as jnp
from jax import lax
from jax.experimental import pallas as pl
from jax.experimental.pallas import tpu as pltpu

LANE = 128   # vreg lane width: channel dims are padded to a multiple of this
K = 3        # BasicBlock uses 3x3 convs


def _round_up(n, m):
    return (n + m - 1) // m * m


# ----------------------------------------------------------------------------
# Fused kernel: conv1(3x3,stride)+BN+ReLU -> conv2(3x3)+BN -> +shortcut -> ReLU
# ----------------------------------------------------------------------------
def _tap(src_ref, kh, kw, Ho, Wo, stride):
    """(Ho, Wo, C) window of a spatially padded (Hp, Wp, C) VMEM ref at tap (kh, kw)."""
    if stride == 1:
        return src_ref[kh:kh + Ho, kw:kw + Wo, :]
    # output (i, j) reads padded input (kh + i*stride, kw + j*stride): strided load
    return src_ref[pl.ds(kh, Ho, stride=stride), pl.ds(kw, Wo, stride=stride), :]


def _conv_im2col(src_ref, w_ref, Ho, Wo, stride):
    """3x3 conv as ONE lane-dense MXU matmul: (Ho*Wo, 9*Cp) @ (9*Cp, Coutp) -> f32."""
    Cp = src_ref.shape[-1]
    taps = []
    for kh in range(K):
        for kw in range(K):
            taps.append(_tap(src_ref, kh, kw, Ho, Wo, stride).reshape(Ho * Wo, Cp))
    patches = jnp.concatenate(taps, axis=-1)     # lane offsets are multiples of 128
    return jnp.dot(patches, w_ref[...], preferred_element_type=jnp.float32)


def basic_block_kernel(x_ref, w1_ref, s1_ref, b1_ref, w2_ref, s2_ref, b2_ref,
                       *rest, stride, has_shortcut):
    if has_shortcut:
        wsc_ref, ssc_ref, bsc_ref, o_ref, xpad, h1pad = rest
    else:
        o_ref, xpad, h1pad = rest

    _, H, W, Cin = x_ref.shape
    _, Ho, Wo, Cp = o_ref.shape

    # in-kernel 'same' padding + channel padding of x into a zeroed VMEM scratch
    xpad[...] = jnp.zeros(xpad.shape, xpad.dtype)
    xpad[1:H + 1, 1:W + 1, :Cin] = x_ref[0].astype(xpad.dtype)

    # conv1 (stride folded into the patch gather) + BN + ReLU — stays in VMEM
    h1 = _conv_im2col(xpad, w1_ref, Ho, Wo, stride)           # (Ho*Wo, Cp) f32
    h1 = jnp.maximum(h1 * s1_ref[...] + b1_ref[...], 0.0)

    h1pad[...] = jnp.zeros(h1pad.shape, h1pad.dtype)
    h1pad[1:Ho + 1, 1:Wo + 1, :] = h1.reshape(Ho, Wo, Cp).astype(h1pad.dtype)

    # conv2 (stride 1) + BN
    y = _conv_im2col(h1pad, w2_ref, Ho, Wo, 1)
    y = y * s2_ref[...] + b2_ref[...]

    # shortcut (projection 1x1 conv + BN, or identity), fused add + final ReLU
    xs = _tap(xpad, 1, 1, Ho, Wo, stride).reshape(Ho * Wo, xpad.shape[-1])
    if has_shortcut:
        sc = jnp.dot(xs, wsc_ref[...], preferred_element_type=jnp.float32)
        sc = sc * ssc_ref[...] + bsc_ref[...]
    else:
        sc = xs.astype(jnp.float32)

    o_ref[0] = jnp.maximum(y + sc, 0.0).reshape(Ho, Wo, Cp).astype(o_ref.dtype)


# ----------------------------------------------------------------------------
# Wrapper: parameter packing + pallas_call
# ----------------------------------------------------------------------------
def _fold_bn(gamma, beta, mean, var, eps=1e-5):
    scale = gamma / jnp.sqrt(var + eps)
    return scale, beta - mean * scale


def _pack_conv_w(w, cin_p, cout_p, dtype):
    """HWIO (k,k,Cin,Cout) -> zero-padded, tap-major im2col weight (k*k*cin_p, cout_p)."""
    k, _, cin, cout = w.shape
    wm = jnp.zeros((k * k, cin_p, cout_p), dtype)
    wm = wm.at[:, :cin, :cout].set(w.reshape(k * k, cin, cout).astype(dtype))
    return wm.reshape(k * k * cin_p, cout_p)


def _pad_row(v, cp):
    return jnp.zeros((1, cp), jnp.float32).at[0, :v.shape[0]].set(v.astype(jnp.float32))


def basic_block_forward(x_nchw, params, stride, compute_dtype=jnp.float32):
    """Pallas implementation of BasicBlock.forward.  Input/output are NCHW."""
    x = jnp.transpose(x_nchw, (0, 2, 3, 1)).astype(compute_dtype)      # -> NHWC
    N, H, W, Cin = x.shape
    Cout = params["w1"].shape[-1]
    Ho = (H - 1) // stride + 1
    Wo = (W - 1) // stride + 1
    Cin_p, Cout_p = _round_up(Cin, LANE), _round_up(Cout, LANE)

    s1, b1 = _fold_bn(*params["bn1"])
    s2, b2 = _fold_bn(*params["bn2"])
    w1m = _pack_conv_w(params["w1"], Cin_p, Cout_p, compute_dtype)
    w2m = _pack_conv_w(params["w2"], Cout_p, Cout_p, compute_dtype)

    def full2d(shape):
        return pl.BlockSpec(shape, lambda n: (0, 0))

    args = [x, w1m, _pad_row(s1, Cout_p), _pad_row(b1, Cout_p),
            w2m, _pad_row(s2, Cout_p), _pad_row(b2, Cout_p)]
    in_specs = [
        pl.BlockSpec((1, H, W, Cin), lambda n: (n, 0, 0, 0)),
        full2d((K * K * Cin_p, Cout_p)),
        full2d((1, Cout_p)), full2d((1, Cout_p)),
        full2d((K * K * Cout_p, Cout_p)),
        full2d((1, Cout_p)), full2d((1, Cout_p)),
    ]

    has_shortcut = bool(params["has_shortcut"])
    if has_shortcut:
        ssc, bsc = _fold_bn(*params["bn_sc"])
        wscm = _pack_conv_w(params["w_sc"], Cin_p, Cout_p, compute_dtype)
        args += [wscm, _pad_row(ssc, Cout_p), _pad_row(bsc, Cout_p)]
        in_specs += [full2d((Cin_p, Cout_p)), full2d((1, Cout_p)), full2d((1, Cout_p))]

    out_p = pl.pallas_call(
        functools.partial(basic_block_kernel, stride=stride, has_shortcut=has_shortcut),
        out_shape=jax.ShapeDtypeStruct((N, Ho, Wo, Cout_p), jnp.float32),
        grid=(N,),
        in_specs=in_specs,
        out_specs=pl.BlockSpec((1, Ho, Wo, Cout_p), lambda n: (n, 0, 0, 0)),
        scratch_shapes=[
            pltpu.VMEM((H + 2, W + 2, Cin_p), compute_dtype),     # zero-padded input
            pltpu.VMEM((Ho + 2, Wo + 2, Cout_p), compute_dtype),  # zero-padded relu(conv1)
        ],
        compiler_params=pltpu.CompilerParams(dimension_semantics=("parallel",)),
    )(*args)

    # drop the lane padding, return NCHW to match the torch contract
    return jnp.transpose(out_p[..., :Cout], (0, 3, 1, 2))


# ----------------------------------------------------------------------------
# Parameter init (deterministic synthetic weights, conv weights stored HWIO)
# ----------------------------------------------------------------------------
def init_basic_block(key, in_channels, out_channels, stride):
    ks = jax.random.split(key, 12)
    p = {
        "w1": jax.random.normal(ks[0], (3, 3, in_channels, out_channels), jnp.float32) * 0.1,
        "w2": jax.random.normal(ks[1], (3, 3, out_channels, out_channels), jnp.float32) * 0.1,
        "bn1": (jax.random.uniform(ks[2], (out_channels,), minval=0.5, maxval=1.5),
                jax.random.normal(ks[3], (out_channels,)) * 0.1,
                jax.random.normal(ks[4], (out_channels,)) * 0.1,
                jax.random.uniform(ks[5], (out_channels,), minval=0.5, maxval=1.5)),
        "bn2": (jax.random.uniform(ks[6], (out_channels,), minval=0.5, maxval=1.5),
                jax.random.normal(ks[7], (out_channels,)) * 0.1,
                jax.random.normal(ks[8], (out_channels,)) * 0.1,
                jax.random.uniform(ks[9], (out_channels,), minval=0.5, maxval=1.5)),
    }
    p["has_shortcut"] = (stride != 1) or (in_channels != out_channels)
    if p["has_shortcut"]:
        p["w_sc"] = jax.random.normal(ks[10], (1, 1, in_channels, out_channels),
                                      jnp.float32) * 0.1
        p["bn_sc"] = (jnp.ones((out_channels,)), jnp.zeros((out_channels,)),
                      jnp.zeros((out_channels,)), jnp.ones((out_channels,)))
    return p


# ----------------------------------------------------------------------------
# Pure-JAX reference (NHWC lax convs) for verification
# ----------------------------------------------------------------------------
def reference_forward(x_nchw, params, stride):
    x = jnp.transpose(x_nchw, (0, 2, 3, 1)).astype(jnp.float32)

    def conv(inp, w, s, pad):
        return lax.conv_general_dilated(
            inp, w, (s, s), [(pad, pad), (pad, pad)],
            dimension_numbers=("NHWC", "HWIO", "NHWC"),
            precision=lax.Precision.HIGHEST)

    s1, b1 = _fold_bn(*params["bn1"])
    s2, b2 = _fold_bn(*params["bn2"])
    h = jnp.maximum(conv(x, params["w1"], stride, 1) * s1 + b1, 0.0)
    h = conv(h, params["w2"], 1, 1) * s2 + b2
    if params["has_shortcut"]:
        ssc, bsc = _fold_bn(*params["bn_sc"])
        sc = conv(x, params["w_sc"], stride, 0) * ssc + bsc
    else:
        sc = x
    return jnp.transpose(jnp.maximum(h + sc, 0.0), (0, 3, 1, 2))


# ----------------------------------------------------------------------------
if __name__ == "__main__":
    key = jax.random.PRNGKey(0)
    kx, kp1, kp2 = jax.random.split(key, 3)

    # Case 1: projection shortcut (stride=2, channel change). x: NCHW [2, 4, 16, 16]
    x = jax.random.normal(kx, (2, 4, 16, 16), jnp.float32)
    params1 = init_basic_block(kp1, in_channels=4, out_channels=8, stride=2)
    out1 = jax.block_until_ready(basic_block_forward(x, params1, stride=2))
    ref1 = reference_forward(x, params1, stride=2)
    assert out1.shape == (2, 8, 8, 8), out1.shape
    assert jnp.allclose(out1, ref1, atol=1e-3, rtol=1e-3), "mismatch (projection, f32)"

    # Case 2: identity shortcut (stride=1, same channels). x: NCHW [2, 8, 16, 16]
    x2 = jax.random.normal(kx, (2, 8, 16, 16), jnp.float32)
    params2 = init_basic_block(kp2, in_channels=8, out_channels=8, stride=1)
    out2 = jax.block_until_ready(basic_block_forward(x2, params2, stride=1))
    ref2 = reference_forward(x2, params2, stride=1)
    assert out2.shape == (2, 8, 16, 16), out2.shape
    assert jnp.allclose(out2, ref2, atol=1e-3, rtol=1e-3), "mismatch (identity, f32)"

    # Case 3: bf16 MXU feed (f32 accumulation + f32 epilogue), loose tolerance.
    out1_bf16 = jax.block_until_ready(
        basic_block_forward(x, params1, stride=2, compute_dtype=jnp.bfloat16))
    assert jnp.allclose(out1_bf16, ref1, atol=1e-1, rtol=1e-1), "mismatch (projection, bf16)"

    print("KERNEL_OK")
</pallas_src>

<mosaic_0001>
module attributes {stable_mosaic.version = 11 : i64} {
  func.func @basic_block_kernel(%arg0: i32, %arg1: memref<1x16x16x4xf32, #tpu.memory_space<vmem>>, %arg2: memref<1152x128xf32, #tpu.memory_space<vmem>>, %arg3: memref<1x128xf32, #tpu.memory_space<vmem>>, %arg4: memref<1x128xf32, #tpu.memory_space<vmem>>, %arg5: memref<1152x128xf32, #tpu.memory_space<vmem>>, %arg6: memref<1x128xf32, #tpu.memory_space<vmem>>, %arg7: memref<1x128xf32, #tpu.memory_space<vmem>>, %arg8: memref<128x128xf32, #tpu.memory_space<vmem>>, %arg9: memref<1x128xf32, #tpu.memory_space<vmem>>, %arg10: memref<1x128xf32, #tpu.memory_space<vmem>>, %arg11: memref<1x8x8x128xf32, #tpu.memory_space<vmem>>, %arg12: memref<18x18x128xf32, #tpu.memory_space<vmem>>, %arg13: memref<10x10x128xf32, #tpu.memory_space<vmem>>) attributes {dimension_semantics = [#tpu.dimension_semantics<parallel>], iteration_bounds = array<i64: 2>, scalar_prefetch = 0 : i64, scratch_operands = 2 : i64, tpu.core_type = #tpu.core_type<tc>, window_params = [{transform_indices = @transform_0, window_bounds = array<i64: 1, 16, 16, 4>}, {pipeline_mode = #tpu.pipeline_mode<synchronous>, transform_indices = @transform_1, window_bounds = array<i64: 1152, 128>}, {pipeline_mode = #tpu.pipeline_mode<synchronous>, transform_indices = @transform_2, window_bounds = array<i64: 1, 128>}, {pipeline_mode = #tpu.pipeline_mode<synchronous>, transform_indices = @transform_3, window_bounds = array<i64: 1, 128>}, {pipeline_mode = #tpu.pipeline_mode<synchronous>, transform_indices = @transform_4, window_bounds = array<i64: 1152, 128>}, {pipeline_mode = #tpu.pipeline_mode<synchronous>, transform_indices = @transform_5, window_bounds = array<i64: 1, 128>}, {pipeline_mode = #tpu.pipeline_mode<synchronous>, transform_indices = @transform_6, window_bounds = array<i64: 1, 128>}, {pipeline_mode = #tpu.pipeline_mode<synchronous>, transform_indices = @transform_7, window_bounds = array<i64: 128, 128>}, {pipeline_mode = #tpu.pipeline_mode<synchronous>, transform_indices = @transform_8, window_bounds = array<i64: 1, 128>}, {pipeline_mode = #tpu.pipeline_mode<synchronous>, transform_indices = @transform_9, window_bounds = array<i64: 1, 128>}, {transform_indices = @transform_10, window_bounds = array<i64: 1, 8, 8, 128>}]} {
    %cst = arith.constant 0.000000e+00 : f32
    %0 = vector.broadcast %cst : f32 to vector<18x18x128xf32>
    %c0 = arith.constant 0 : index
    %c0_0 = arith.constant 0 : index
    %c0_1 = arith.constant 0 : index
    %1 = vector.load %arg12[%c0, %c0_0, %c0_1] : memref<18x18x128xf32, #tpu.memory_space<vmem>>, vector<18x18x128xf32>
    tpu.vector_store %arg12[%c0, %c0_0, %c0_1], %0 {strides = array<i32>} : memref<18x18x128xf32, #tpu.memory_space<vmem>>, vector<18x18x128xf32>,
    %c0_2 = arith.constant 0 : index
    %c0_3 = arith.constant 0 : index
    %c0_4 = arith.constant 0 : index
    %c0_5 = arith.constant 0 : index
    %2 = vector.load %arg1[%c0_2, %c0_3, %c0_4, %c0_5] : memref<1x16x16x4xf32, #tpu.memory_space<vmem>>, vector<1x16x16x4xf32>
    %3 = vector.shape_cast %2 : vector<1x16x16x4xf32> to vector<16x16x4xf32>
    %c1 = arith.constant 1 : index
    %c1_6 = arith.constant 1 : index
    %c0_7 = arith.constant 0 : index
    %4 = vector.load %arg12[%c1, %c1_6, %c0_7] : memref<18x18x128xf32, #tpu.memory_space<vmem>>, vector<16x16x4xf32>
    tpu.vector_store %arg12[%c1, %c1_6, %c0_7], %3 {strides = array<i32>} : memref<18x18x128xf32, #tpu.memory_space<vmem>>, vector<16x16x4xf32>,
    %c0_8 = arith.constant 0 : index
    %c0_9 = arith.constant 0 : index
    %c0_10 = arith.constant 0 : index
    %5 = tpu.strided_load %arg12[%c0_8, %c0_9, %c0_10] {strides = array<i32: 2, 2, 1>} : memref<18x18x128xf32, #tpu.memory_space<vmem>>, vector<8x8x128xf32>
    %6 = vector.shape_cast %5 : vector<8x8x128xf32> to vector<64x128xf32>
    %c0_11 = arith.constant 0 : index
    %c1_12 = arith.constant 1 : index
    %c0_13 = arith.constant 0 : index
    %7 = tpu.strided_load %arg12[%c0_11, %c1_12, %c0_13] {strides = array<i32: 2, 2, 1>} : memref<18x18x128xf32, #tpu.memory_space<vmem>>, vector<8x8x128xf32>
    %8 = vector.shape_cast %7 : vector<8x8x128xf32> to vector<64x128xf32>
    %c0_14 = arith.constant 0 : index
    %c2 = arith.constant 2 : index
    %c0_15 = arith.constant 0 : index
    %9 = tpu.strided_load %arg12[%c0_14, %c2, %c0_15] {strides = array<i32: 2, 2, 1>} : memref<18x18x128xf32, #tpu.memory_space<vmem>>, vector<8x8x128xf32>
    %10 = vector.shape_cast %9 : vector<8x8x128xf32> to vector<64x128xf32>
    %c1_16 = arith.constant 1 : index
    %c0_17 = arith.constant 0 : index
    %c0_18 = arith.constant 0 : index
    %11 = tpu.strided_load %arg12[%c1_16, %c0_17, %c0_18] {strides = array<i32: 2, 2, 1>} : memref<18x18x128xf32, #tpu.memory_space<vmem>>, vector<8x8x128xf32>
    %12 = vector.shape_cast %11 : vector<8x8x128xf32> to vector<64x128xf32>
    %c1_19 = arith.constant 1 : index
    %c1_20 = arith.constant 1 : index
    %c0_21 = arith.constant 0 : index
    %13 = tpu.strided_load %arg12[%c1_19, %c1_20, %c0_21] {strides = array<i32: 2, 2, 1>} : memref<18x18x128xf32, #tpu.memory_space<vmem>>, vector<8x8x128xf32>
    %14 = vector.shape_cast %13 : vector<8x8x128xf32> to vector<64x128xf32>
    %c1_22 = arith.constant 1 : index
    %c2_23 = arith.constant 2 : index
    %c0_24 = arith.constant 0 : index
    %15 = tpu.strided_load %arg12[%c1_22, %c2_23, %c0_24] {strides = array<i32: 2, 2, 1>} : memref<18x18x128xf32, #tpu.memory_space<vmem>>, vector<8x8x128xf32>
    %16 = vector.shape_cast %15 : vector<8x8x128xf32> to vector<64x128xf32>
    %c2_25 = arith.constant 2 : index
    %c0_26 = arith.constant 0 : index
    %c0_27 = arith.constant 0 : index
    %17 = tpu.strided_load %arg12[%c2_25, %c0_26, %c0_27] {strides = array<i32: 2, 2, 1>} : memref<18x18x128xf32, #tpu.memory_space<vmem>>, vector<8x8x128xf32>
    %18 = vector.shape_cast %17 : vector<8x8x128xf32> to vector<64x128xf32>
    %c2_28 = arith.constant 2 : index
    %c1_29 = arith.constant 1 : index
    %c0_30 = arith.constant 0 : index
    %19 = tpu.strided_load %arg12[%c2_28, %c1_29, %c0_30] {strides = array<i32: 2, 2, 1>} : memref<18x18x128xf32, #tpu.memory_space<vmem>>, vector<8x8x128xf32>
    %20 = vector.shape_cast %19 : vector<8x8x128xf32> to vector<64x128xf32>
    %c2_31 = arith.constant 2 : index
    %c2_32 = arith.constant 2 : index
    %c0_33 = arith.constant 0 : index
    %21 = tpu.strided_load %arg12[%c2_31, %c2_32, %c0_33] {strides = array<i32: 2, 2, 1>} : memref<18x18x128xf32, #tpu.memory_space<vmem>>, vector<8x8x128xf32>
    %22 = vector.shape_cast %21 : vector<8x8x128xf32> to vector<64x128xf32>
    %23 = tpu.concatenate %6, %8, %10, %12, %14, %16, %18, %20, %22 in 1 : vector<64x128xf32>, vector<64x128xf32>, vector<64x128xf32>, vector<64x128xf32>, vector<64x128xf32>, vector<64x128xf32>, vector<64x128xf32>, vector<64x128xf32>, vector<64x128xf32> -> vector<64x1152xf32>
    %c0_34 = arith.constant 0 : index
    %c0_35 = arith.constant 0 : index
    %24 = vector.load %arg2[%c0_34, %c0_35] : memref<1152x128xf32, #tpu.memory_space<vmem>>, vector<1152x128xf32>
    %cst_36 = arith.constant dense<0.000000e+00> : vector<64x128xf32>
    %25 = tpu.matmul %23, %24, %cst_36 {dimension_numbers = #tpu.dot_dimension_numbers<[1], [0], [0], [1], [0, 0, 1, 1], [], []>} : vector<64x1152xf32>, vector<1152x128xf32>, vector<64x128xf32> -> vector<64x128xf32>
    %c0_37 = arith.constant 0 : index
    %c0_38 = arith.constant 0 : index
    %26 = vector.load %arg3[%c0_37, %c0_38] : memref<1x128xf32, #tpu.memory_space<vmem>>, vector<1x128xf32>
    %27 = vector.broadcast %26 : vector<1x128xf32> to vector<64x128xf32>
    %28 = arith.mulf %25, %27 : vector<64x128xf32>
    %c0_39 = arith.constant 0 : index
    %c0_40 = arith.constant 0 : index
    %29 = vector.load %arg4[%c0_39, %c0_40] : memref<1x128xf32, #tpu.memory_space<vmem>>, vector<1x128xf32>
    %30 = vector.broadcast %29 : vector<1x128xf32> to vector<64x128xf32>
    %31 = arith.addf %28, %30 : vector<64x128xf32>
    %cst_41 = arith.constant 0.000000e+00 : f32
    %32 = vector.broadcast %cst_41 : f32 to vector<64x128xf32>
    %33 = arith.maximumf %31, %32 : vector<64x128xf32>
    %cst_42 = arith.constant 0.000000e+00 : f32
    %34 = vector.broadcast %cst_42 : f32 to vector<10x10x128xf32>
    %c0_43 = arith.constant 0 : index
    %c0_44 = arith.constant 0 : index
    %c0_45 = arith.constant 0 : index
    %35 = vector.load %arg13[%c0_43, %c0_44, %c0_45] : memref<10x10x128xf32, #tpu.memory_space<vmem>>, vector<10x10x128xf32>
    tpu.vector_store %arg13[%c0_43, %c0_44, %c0_45], %34 {strides = array<i32>} : memref<10x10x128xf32, #tpu.memory_space<vmem>>, vector<10x10x128xf32>,
    %36 = vector.shape_cast %33 : vector<64x128xf32> to vector<8x8x128xf32>
    %c1_46 = arith.constant 1 : index
    %c1_47 = arith.constant 1 : index
    %c0_48 = arith.constant 0 : index
    %37 = vector.load %arg13[%c1_46, %c1_47, %c0_48] : memref<10x10x128xf32, #tpu.memory_space<vmem>>, vector<8x8x128xf32>
    tpu.vector_store %arg13[%c1_46, %c1_47, %c0_48], %36 {strides = array<i32>} : memref<10x10x128xf32, #tpu.memory_space<vmem>>, vector<8x8x128xf32>,
    %c0_49 = arith.constant 0 : index
    %c0_50 = arith.constant 0 : index
    %c0_51 = arith.constant 0 : index
    %38 = vector.load %arg13[%c0_49, %c0_50, %c0_51] : memref<10x10x128xf32, #tpu.memory_space<vmem>>, vector<8x8x128xf32>
    %39 = vector.shape_cast %38 : vector<8x8x128xf32> to vector<64x128xf32>
    %c0_52 = arith.constant 0 : index
    %c1_53 = arith.constant 1 : index
    %c0_54 = arith.constant 0 : index
    %40 = vector.load %arg13[%c0_52, %c1_53, %c0_54] : memref<10x10x128xf32, #tpu.memory_space<vmem>>, vector<8x8x128xf32>
    %41 = vector.shape_cast %40 : vector<8x8x128xf32> to vector<64x128xf32>
    %c0_55 = arith.constant 0 : index
    %c2_56 = arith.constant 2 : index
    %c0_57 = arith.constant 0 : index
    %42 = vector.load %arg13[%c0_55, %c2_56, %c0_57] : memref<10x10x128xf32, #tpu.memory_space<vmem>>, vector<8x8x128xf32>
    %43 = vector.shape_cast %42 : vector<8x8x128xf32> to vector<64x128xf32>
    %c1_58 = arith.constant 1 : index
    %c0_59 = arith.constant 0 : index
    %c0_60 = arith.constant 0 : index
    %44 = vector.load %arg13[%c1_58, %c0_59, %c0_60] : memref<10x10x128xf32, #tpu.memory_space<vmem>>, vector<8x8x128xf32>
    %45 = vector.shape_cast %44 : vector<8x8x128xf32> to vector<64x128xf32>
    %c1_61 = arith.constant 1 : index
    %c1_62 = arith.constant 1 : index
    %c0_63 = arith.constant 0 : index
    %46 = vector.load %arg13[%c1_61, %c1_62, %c0_63] : memref<10x10x128xf32, #tpu.memory_space<vmem>>, vector<8x8x128xf32>
    %47 = vector.shape_cast %46 : vector<8x8x128xf32> to vector<64x128xf32>
    %c1_64 = arith.constant 1 : index
    %c2_65 = arith.constant 2 : index
    %c0_66 = arith.constant 0 : index
    %48 = vector.load %arg13[%c1_64, %c2_65, %c0_66] : memref<10x10x128xf32, #tpu.memory_space<vmem>>, vector<8x8x128xf32>
    %49 = vector.shape_cast %48 : vector<8x8x128xf32> to vector<64x128xf32>
    %c2_67 = arith.constant 2 : index
    %c0_68 = arith.constant 0 : index
    %c0_69 = arith.constant 0 : index
    %50 = vector.load %arg13[%c2_67, %c0_68, %c0_69] : memref<10x10x128xf32, #tpu.memory_space<vmem>>, vector<8x8x128xf32>
    %51 = vector.shape_cast %50 : vector<8x8x128xf32> to vector<64x128xf32>
    %c2_70 = arith.constant 2 : index
    %c1_71 = arith.constant 1 : index
    %c0_72 = arith.constant 0 : index
    %52 = vector.load %arg13[%c2_70, %c1_71, %c0_72] : memref<10x10x128xf32, #tpu.memory_space<vmem>>, vector<8x8x128xf32>
    %53 = vector.shape_cast %52 : vector<8x8x128xf32> to vector<64x128xf32>
    %c2_73 = arith.constant 2 : index
    %c2_74 = arith.constant 2 : index
    %c0_75 = arith.constant 0 : index
    %54 = vector.load %arg13[%c2_73, %c2_74, %c0_75] : memref<10x10x128xf32, #tpu.memory_space<vmem>>, vector<8x8x128xf32>
    %55 = vector.shape_cast %54 : vector<8x8x128xf32> to vector<64x128xf32>
    %56 = tpu.concatenate %39, %41, %43, %45, %47, %49, %51, %53, %55 in 1 : vector<64x128xf32>, vector<64x128xf32>, vector<64x128xf32>, vector<64x128xf32>, vector<64x128xf32>, vector<64x128xf32>, vector<64x128xf32>, vector<64x128xf32>, vector<64x128xf32> -> vector<64x1152xf32>
    %c0_76 = arith.constant 0 : index
    %c0_77 = arith.constant 0 : index
    %57 = vector.load %arg5[%c0_76, %c0_77] : memref<1152x128xf32, #tpu.memory_space<vmem>>, vector<1152x128xf32>
    %cst_78 = arith.constant dense<0.000000e+00> : vector<64x128xf32>
    %58 = tpu.matmul %56, %57, %cst_78 {dimension_numbers = #tpu.dot_dimension_numbers<[1], [0], [0], [1], [0, 0, 1, 1], [], []>} : vector<64x1152xf32>, vector<1152x128xf32>, vector<64x128xf32> -> vector<64x128xf32>
    %c0_79 = arith.constant 0 : index
    %c0_80 = arith.constant 0 : index
    %59 = vector.load %arg6[%c0_79, %c0_80] : memref<1x128xf32, #tpu.memory_space<vmem>>, vector<1x128xf32>
    %60 = vector.broadcast %59 : vector<1x128xf32> to vector<64x128xf32>
    %61 = arith.mulf %58, %60 : vector<64x128xf32>
    %c0_81 = arith.constant 0 : index
    %c0_82 = arith.constant 0 : index
    %62 = vector.load %arg7[%c0_81, %c0_82] : memref<1x128xf32, #tpu.memory_space<vmem>>, vector<1x128xf32>
    %63 = vector.broadcast %62 : vector<1x128xf32> to vector<64x128xf32>
    %64 = arith.addf %61, %63 : vector<64x128xf32>
    %c1_83 = arith.constant 1 : index
    %c1_84 = arith.constant 1 : index
    %c0_85 = arith.constant 0 : index
    %65 = tpu.strided_load %arg12[%c1_83, %c1_84, %c0_85] {strides = array<i32: 2, 2, 1>} : memref<18x18x128xf32, #tpu.memory_space<vmem>>, vector<8x8x128xf32>
    %66 = vector.shape_cast %65 : vector<8x8x128xf32> to vector<64x128xf32>
    %c0_86 = arith.constant 0 : index
    %c0_87 = arith.constant 0 : index
    %67 = vector.load %arg8[%c0_86, %c0_87] : memref<128x128xf32, #tpu.memory_space<vmem>>, vector<128x128xf32>
    %cst_88 = arith.constant dense<0.000000e+00> : vector<64x128xf32>
    %68 = tpu.matmul %66, %67, %cst_88 {dimension_numbers = #tpu.dot_dimension_numbers<[1], [0], [0], [1], [0, 0, 1, 1], [], []>} : vector<64x128xf32>, vector<128x128xf32>, vector<64x128xf32> -> vector<64x128xf32>
    %c0_89 = arith.constant 0 : index
    %c0_90 = arith.constant 0 : index
    %69 = vector.load %arg9[%c0_89, %c0_90] : memref<1x128xf32, #tpu.memory_space<vmem>>, vector<1x128xf32>
    %70 = vector.broadcast %69 : vector<1x128xf32> to vector<64x128xf32>
    %71 = arith.mulf %68, %70 : vector<64x128xf32>
    %c0_91 = arith.constant 0 : index
    %c0_92 = arith.constant 0 : index
    %72 = vector.load %arg10[%c0_91, %c0_92] : memref<1x128xf32, #tpu.memory_space<vmem>>, vector<1x128xf32>
    %73 = vector.broadcast %72 : vector<1x128xf32> to vector<64x128xf32>
    %74 = arith.addf %71, %73 : vector<64x128xf32>
    %75 = arith.addf %64, %74 : vector<64x128xf32>
    %cst_93 = arith.constant 0.000000e+00 : f32
    %76 = vector.broadcast %cst_93 : f32 to vector<64x128xf32>
    %77 = arith.maximumf %75, %76 : vector<64x128xf32>
    %78 = vector.shape_cast %77 : vector<64x128xf32> to vector<8x8x128xf32>
    %c0_94 = arith.constant 0 : index
    %c0_95 = arith.constant 0 : index
    %c0_96 = arith.constant 0 : index
    %c0_97 = arith.constant 0 : index
    %79 = vector.load %arg11[%c0_94, %c0_95, %c0_96, %c0_97] : memref<1x8x8x128xf32, #tpu.memory_space<vmem>>, vector<1x8x8x128xf32>
    %80 = vector.shape_cast %79 : vector<1x8x8x128xf32> to vector<8x8x128xf32>
    %81 = vector.shape_cast %78 : vector<8x8x128xf32> to vector<1x8x8x128xf32>
    tpu.vector_store %arg11[%c0_94, %c0_95, %c0_96, %c0_97], %81 {strides = array<i32>} : memref<1x8x8x128xf32, #tpu.memory_space<vmem>>, vector<1x8x8x128xf32>,
    return
  }
  func.func @transform_0(%arg0: i32) -> (i32, i32, i32, i32) {
    %c0_i32 = arith.constant 0 : i32
    %c0_i32_0 = arith.constant 0 : i32
    %c0_i32_1 = arith.constant 0 : i32
    %c0_i32_2 = arith.constant 0 : i32
    return %arg0, %c0_i32, %c0_i32_0, %c0_i32_1 : i32, i32, i32, i32
  }
  func.func @transform_1(%arg0: i32) -> (i32, i32) {
    %c0_i32 = arith.constant 0 : i32
    %c0_i32_0 = arith.constant 0 : i32
    %c0_i32_1 = arith.constant 0 : i32
    return %c0_i32, %c0_i32_0 : i32, i32
  }
  func.func @transform_2(%arg0: i32) -> (i32, i32) {
    %c0_i32 = arith.constant 0 : i32
    %c0_i32_0 = arith.constant 0 : i32
    %c0_i32_1 = arith.constant 0 : i32
    return %c0_i32, %c0_i32_0 : i32, i32
  }
  func.func @transform_3(%arg0: i32) -> (i32, i32) {
    %c0_i32 = arith.constant 0 : i32
    %c0_i32_0 = arith.constant 0 : i32
    %c0_i32_1 = arith.constant 0 : i32
    return %c0_i32, %c0_i32_0 : i32, i32
  }
  func.func @transform_4(%arg0: i32) -> (i32, i32) {
    %c0_i32 = arith.constant 0 : i32
    %c0_i32_0 = arith.constant 0 : i32
    %c0_i32_1 = arith.constant 0 : i32
    return %c0_i32, %c0_i32_0 : i32, i32
  }
  func.func @transform_5(%arg0: i32) -> (i32, i32) {
    %c0_i32 = arith.constant 0 : i32
    %c0_i32_0 = arith.constant 0 : i32
    %c0_i32_1 = arith.constant 0 : i32
    return %c0_i32, %c0_i32_0 : i32, i32
  }
  func.func @transform_6(%arg0: i32) -> (i32, i32) {
    %c0_i32 = arith.constant 0 : i32
    %c0_i32_0 = arith.constant 0 : i32
    %c0_i32_1 = arith.constant 0 : i32
    return %c0_i32, %c0_i32_0 : i32, i32
  }
  func.func @transform_7(%arg0: i32) -> (i32, i32) {
    %c0_i32 = arith.constant 0 : i32
    %c0_i32_0 = arith.constant 0 : i32
    %c0_i32_1 = arith.constant 0 : i32
    return %c0_i32, %c0_i32_0 : i32, i32
  }
  func.func @transform_8(%arg0: i32) -> (i32, i32) {
    %c0_i32 = arith.constant 0 : i32
    %c0_i32_0 = arith.constant 0 : i32
    %c0_i32_1 = arith.constant 0 : i32
    return %c0_i32, %c0_i32_0 : i32, i32
  }
  func.func @transform_9(%arg0: i32) -> (i32, i32) {
    %c0_i32 = arith.constant 0 : i32
    %c0_i32_0 = arith.constant 0 : i32
    %c0_i32_1 = arith.constant 0 : i32
    return %c0_i32, %c0_i32_0 : i32, i32
  }
  func.func @transform_10(%arg0: i32) -> (i32, i32, i32, i32) {
    %c0_i32 = arith.constant 0 : i32
    %c0_i32_0 = arith.constant 0 : i32
    %c0_i32_1 = arith.constant 0 : i32
    %c0_i32_2 = arith.constant 0 : i32
    return %arg0, %c0_i32, %c0_i32_0, %c0_i32_1 : i32, i32, i32, i32
  }
}

</mosaic_0001>

<llo_original>
// kernel: tpu_custom_call.1
$region0: #{tpu_custom_call.1}
  #allocation0 [shape = 'u32[]', space=smem, size = 0x4, offset = 0x4, fixed_abs, tag = 'smem constant byte address 0x4 - core index']
  #allocation1 [shape = 'u32[72,128]{1,0:T(1,128)}', space=vmem, size = 0x9000, scoped, tag = 'internal scratch']
  #allocation2 [shape = 'f32[18,18,128]{2,1,0:T(8,128)}', space=vmem, size = 0x36000, scoped, tag = 'scratch operand']
  #allocation3 [shape = 'f32[10,10,128]{2,1,0:T(8,128)}', space=vmem, size = 0x14000, scoped, tag = 'scratch operand']
  %s0 = inlined_call_operand.vmem [shape: f32[2,16,16,4], index: 0, kind: input, shape index: {}]
  %s1 = inlined_call_operand.hbm [shape: f32[1152,128], index: 1, kind: input, shape index: {}]
  %s2 = inlined_call_operand.vmem [shape: f32[1,128], index: 2, kind: input, shape index: {}]
  %s3 = inlined_call_operand.vmem [shape: f32[1,128], index: 3, kind: input, shape index: {}]
  %s4 = inlined_call_operand.hbm [shape: f32[1152,128], index: 4, kind: input, shape index: {}]
  %s5 = inlined_call_operand.vmem [shape: f32[1,128], index: 5, kind: input, shape index: {}]
  %s6 = inlined_call_operand.vmem [shape: f32[1,128], index: 6, kind: input, shape index: {}]
  %s7 = inlined_call_operand.vmem [shape: f32[128,128], index: 7, kind: input, shape index: {}]
  %s8 = inlined_call_operand.vmem [shape: f32[1,128], index: 8, kind: input, shape index: {}]
  %s9 = inlined_call_operand.vmem [shape: f32[1,128], index: 9, kind: input, shape index: {}]
  %s10 = inlined_call_operand.hbm [shape: f32[2,8,8,128], index: 10, kind: output, shape index: {}]
  %s11 = sld [smem:[#allocation0]]
  $region81: #{tpu_custom_call.1} parent=0
    _
  %s13 = ssub.s32 1, %s11
  %s14 = scalar_select 0, %s13, %s11
  $region1: #{tpu_custom_call.1} parent=0
    #allocation4 [shape = 'u8[589824]{0}', space=vmem, size = 0x90000, scoped, tag = 'input window, operand 1, single buffered']
    #allocation5 [shape = 's32[2]{0}', space=sflag, size = 0x8, scoped, tag = 'scoped memory for tpu_custom_call.1']
    #allocation6 [shape = 's32[2]{0}', space=sflag, size = 0x8, scoped, tag = 'scoped memory for tpu_custom_call.1']
    #allocation7 [shape = 'u8[589824]{0}', space=vmem, size = 0x90000, scoped, tag = 'input window, operand 4, single buffered']
    #allocation8 [shape = 's32[1]{0}', space=sflag, size = 0x4, scoped, tag = 'scoped memory for tpu_custom_call.1']
    #allocation9 [shape = 'u8[65536]{0}', space=vmem, size = 0x10000, scoped, tag = 'output window, operand 0']
    %15 = vsyncpa [#allocation5], 0
    %16 = vsyncpa [#allocation8], 0
    %17 = vsyncpa [#allocation6], 0
    %s18 = scalar_lea.sflag [#allocation6], 1
    %19 = vsyncpa %s18, 0
    loop: start=0, step=1, limit=4
    $region2: #{tpu_custom_call.1} parent=1 // loop_pre_header
      _
    $region3: #{tpu_custom_call.1} parent=1 // loop_header
      %s21 = sphi 0, %s25
      %p22 = scmp.ge.s32.totalorder %s21, 4
      %s31 = sphi 0, %s33
      %s34 = sphi 0, %s31
      %s35 = sphi 0, %s34
      %s51 = sphi 0, %s35
      %s55 = sphi 0, %s55
      %s57 = sphi 0, %s55
      %s58 = sphi 0, %s57
      %s72 = sphi 0, %s58
      %s76 = sphi 0, %s76
      %s78 = sphi 0, %s76
      %s79 = sphi 0, %s78
      %s93 = sphi 0, %s79
      %s97 = sphi 0, %s97
      %s99 = sphi 0, %s97
      %s100 = sphi 0, %s99
      %s114 = sphi 0, %s100
      %s118 = sphi 0, %s118
      %s120 = sphi 0, %s118
      %s121 = sphi 0, %s120
      %s135 = sphi 0, %s121
      %s139 = sphi 0, %s139
      %s141 = sphi 0, %s139
      %s142 = sphi 0, %s141
      %s156 = sphi 0, %s142
      %s160 = sphi 0, %s160
      %s162 = sphi 0, %s160
      %s163 = sphi 0, %s162
      %s177 = sphi 0, %s163
      %s181 = sphi 0, %s181
      %s183 = sphi 0, %s181
      %s184 = sphi 0, %s183
      %s198 = sphi 0, %s184
      %s202 = sphi 0, %s202
      %s204 = sphi 0, %s202
      %s205 = sphi 0, %s204
      %s219 = sphi 0, %s205
      %s223 = sphi 0, %s223
      %s225 = sphi 0, %s223
      %s226 = sphi 0, %s225
      %s240 = sphi 0, %s226
      %s246 = sphi 0, %s248
      %s249 = sphi 0, %s246
      %s250 = sphi 0, %s249
      %s266 = sphi 0, %s250
    $region4: #{tpu_custom_call.1} parent=1 // loop_header_branch
      %24 = sbr.rel (%p22) target = $region8
    $region5: #{tpu_custom_call.1} parent=1 // loop_body
      %s26 = ssub.s32 %s21, 1
      %s27 = ssub.s32 %s21, 2
      %s28 = sadd.s32 %s21, 1
      %s29 = ssub.s32 %s21, %s28
      %p30 = scmp.eq.s32.totalorder %s29, 0
      %s32 = sadd.s32 %s31, 1
      %s33 = scalar_select %p30, %s31, %s32
      %p36 = pneg %p30
      %p37 = scmp.eq.s32.totalorder %s21, 1
      %p38 = por %p36, %p37
      %p39 = scmp.ne.s32.totalorder %s31, %s34
      %p40 = scmp.eq.s32.totalorder %s21, 0
      %p41 = por %p39, %p40
      %p42 = scmp.ne.s32.totalorder %s31, %s34
      %p43 = scmp.eq.s32.totalorder %s26, 1
      %p44 = por %p42, %p43
      %p45 = scmp.ne.s32.totalorder %s34, %s35
      %p46 = scmp.eq.s32.totalorder %s26, 0
      %p47 = por %p45, %p46
      %p48 = scmp.ne.s32.totalorder %s34, %s35
      %p49 = scmp.eq.s32.totalorder %s27, 1
      %p50 = por %p48, %p49
      %p52 = scmp.ne.s32.totalorder %s35, %s51
      %p53 = scmp.eq.s32.totalorder %s27, 0
      %p54 = por %p52, %p53
      %s56 = sadd.s32 %s55, 1
      %p59 = scmp.eq.s32.totalorder %s21, 1
      %p60 = scmp.ne.s32.totalorder %s55, %s57
      %p61 = scmp.eq.s32.totalorder %s21, 0
      %p62 = por %p60, %p61
      %p63 = scmp.ne.s32.totalorder %s55, %s57
      %p64 = scmp.eq.s32.totalorder %s26, 1
      %p65 = por %p63, %p64
      %p66 = scmp.ne.s32.totalorder %s57, %s58
      %p67 = scmp.eq.s32.totalorder %s26, 0
      %p68 = por %p66, %p67
      %p69 = scmp.ne.s32.totalorder %s57, %s58
      %p70 = scmp.eq.s32.totalorder %s27, 1
      %p71 = por %p69, %p70
      %p73 = scmp.ne.s32.totalorder %s58, %s72
      %p74 = scmp.eq.s32.totalorder %s27, 0
      %p75 = por %p73, %p74
      %s77 = sadd.s32 %s76, 1
      %p80 = scmp.eq.s32.totalorder %s21, 1
      %p81 = scmp.ne.s32.totalorder %s76, %s78
      %p82 = scmp.eq.s32.totalorder %s21, 0
      %p83 = por %p81, %p82
      %p84 = scmp.ne.s32.totalorder %s76, %s78
      %p85 = scmp.eq.s32.totalorder %s26, 1
      %p86 = por %p84, %p85
      %p87 = scmp.ne.s32.totalorder %s78, %s79
      %p88 = scmp.eq.s32.totalorder %s26, 0
      %p89 = por %p87, %p88
      %p90 = scmp.ne.s32.totalorder %s78, %s79
      %p91 = scmp.eq.s32.totalorder %s27, 1
      %p92 = por %p90, %p91
      %p94 = scmp.ne.s32.totalorder %s79, %s93
      %p95 = scmp.eq.s32.totalorder %s27, 0
      %p96 = por %p94, %p95
      %s98 = sadd.s32 %s97, 1
      %p101 = scmp.eq.s32.totalorder %s21, 1
      %p102 = scmp.ne.s32.totalorder %s97, %s99
      %p103 = scmp.eq.s32.totalorder %s21, 0
      %p104 = por %p102, %p103
      %p105 = scmp.ne.s32.totalorder %s97, %s99
      %p106 = scmp.eq.s32.totalorder %s26, 1
      %p107 = por %p105, %p106
      %p108 = scmp.ne.s32.totalorder %s99, %s100
      %p109 = scmp.eq.s32.totalorder %s26, 0
      %p110 = por %p108, %p109
      %p111 = scmp.ne.s32.totalorder %s99, %s100
      %p112 = scmp.eq.s32.totalorder %s27, 1
      %p113 = por %p111, %p112
      %p115 = scmp.ne.s32.totalorder %s100, %s114
      %p116 = scmp.eq.s32.totalorder %s27, 0
      %p117 = por %p115, %p116
      %s119 = sadd.s32 %s118, 1
      %p122 = scmp.eq.s32.totalorder %s21, 1
      %p123 = scmp.ne.s32.totalorder %s118, %s120
      %p124 = scmp.eq.s32.totalorder %s21, 0
      %p125 = por %p123, %p124
      %p126 = scmp.ne.s32.totalorder %s118, %s120
      %p127 = scmp.eq.s32.totalorder %s26, 1
      %p128 = por %p126, %p127
      %p129 = scmp.ne.s32.totalorder %s120, %s121
      %p130 = scmp.eq.s32.totalorder %s26, 0
      %p131 = por %p129, %p130
      %p132 = scmp.ne.s32.totalorder %s120, %s121
      %p133 = scmp.eq.s32.totalorder %s27, 1
      %p134 = por %p132, %p133
      %p136 = scmp.ne.s32.totalorder %s121, %s135
      %p137 = scmp.eq.s32.totalorder %s27, 0
      %p138 = por %p136, %p137
      %s140 = sadd.s32 %s139, 1
      %p143 = scmp.eq.s32.totalorder %s21, 1
      %p144 = scmp.ne.s32.totalorder %s139, %s141
      %p145 = scmp.eq.s32.totalorder %s21, 0
      %p146 = por %p144, %p145
      %p147 = scmp.ne.s32.totalorder %s139, %s141
      %p148 = scmp.eq.s32.totalorder %s26, 1
      %p149 = por %p147, %p148
      %p150 = scmp.ne.s32.totalorder %s141, %s142
      %p151 = scmp.eq.s32.totalorder %s26, 0
      %p152 = por %p150, %p151
      %p153 = scmp.ne.s32.totalorder %s141, %s142
      %p154 = scmp.eq.s32.totalorder %s27, 1
      %p155 = por %p153, %p154
      %p157 = scmp.ne.s32.totalorder %s142, %s156
      %p158 = scmp.eq.s32.totalorder %s27, 0
      %p159 = por %p157, %p158
      %s161 = sadd.s32 %s160, 1
      %p164 = scmp.eq.s32.totalorder %s21, 1
      %p165 = scmp.ne.s32.totalorder %s160, %s162
      %p166 = scmp.eq.s32.totalorder %s21, 0
      %p167 = por %p165, %p166
      %p168 = scmp.ne.s32.totalorder %s160, %s162
      %p169 = scmp.eq.s32.totalorder %s26, 1
      %p170 = por %p168, %p169
      %p171 = scmp.ne.s32.totalorder %s162, %s163
      %p172 = scmp.eq.s32.totalorder %s26, 0
      %p173 = por %p171, %p172
      %p174 = scmp.ne.s32.totalorder %s162, %s163
      %p175 = scmp.eq.s32.totalorder %s27, 1
      %p176 = por %p174, %p175
      %p178 = scmp.ne.s32.totalorder %s163, %s177
      %p179 = scmp.eq.s32.totalorder %s27, 0
      %p180 = por %p178, %p179
      %s182 = sadd.s32 %s181, 1
      %p185 = scmp.eq.s32.totalorder %s21, 1
      %p186 = scmp.ne.s32.totalorder %s181, %s183
      %p187 = scmp.eq.s32.totalorder %s21, 0
      %p188 = por %p186, %p187
      %p189 = scmp.ne.s32.totalorder %s181, %s183
      %p190 = scmp.eq.s32.totalorder %s26, 1
      %p191 = por %p189, %p190
      %p192 = scmp.ne.s32.totalorder %s183, %s184
      %p193 = scmp.eq.s32.totalorder %s26, 0
      %p194 = por %p192, %p193
      %p195 = scmp.ne.s32.totalorder %s183, %s184
      %p196 = scmp.eq.s32.totalorder %s27, 1
      %p197 = por %p195, %p196
      %p199 = scmp.ne.s32.totalorder %s184, %s198
      %p200 = scmp.eq.s32.totalorder %s27, 0
      %p201 = por %p199, %p200
      %s203 = sadd.s32 %s202, 1
      %p206 = scmp.eq.s32.totalorder %s21, 1
      %p207 = scmp.ne.s32.totalorder %s202, %s204
      %p208 = scmp.eq.s32.totalorder %s21, 0
      %p209 = por %p207, %p208
      %p210 = scmp.ne.s32.totalorder %s202, %s204
      %p211 = scmp.eq.s32.totalorder %s26, 1
      %p212 = por %p210, %p211
      %p213 = scmp.ne.s32.totalorder %s204, %s205
      %p214 = scmp.eq.s32.totalorder %s26, 0
      %p215 = por %p213, %p214
      %p216 = scmp.ne.s32.totalorder %s204, %s205
      %p217 = scmp.eq.s32.totalorder %s27, 1
      %p218 = por %p216, %p217
      %p220 = scmp.ne.s32.totalorder %s205, %s219
      %p221 = scmp.eq.s32.totalorder %s27, 0
      %p222 = por %p220, %p221
      %s224 = sadd.s32 %s223, 1
      %p227 = scmp.eq.s32.totalorder %s21, 1
      %p228 = scmp.ne.s32.totalorder %s223, %s225
      %p229 = scmp.eq.s32.totalorder %s21, 0
      %p230 = por %p228, %p229
      %p231 = scmp.ne.s32.totalorder %s223, %s225
      %p232 = scmp.eq.s32.totalorder %s26, 1
      %p233 = por %p231, %p232
      %p234 = scmp.ne.s32.totalorder %s225, %s226
      %p235 = scmp.eq.s32.totalorder %s26, 0
      %p236 = por %p234, %p235
      %p237 = scmp.ne.s32.totalorder %s225, %s226
      %p238 = scmp.eq.s32.totalorder %s27, 1
      %p239 = por %p237, %p238
      %p241 = scmp.ne.s32.totalorder %s226, %s240
      %p242 = scmp.eq.s32.totalorder %s27, 0
      %p243 = por %p241, %p242
      %s244 = ssub.s32 %s21, %s28
      %p245 = scmp.eq.s32.totalorder %s244, 0
      %s247 = sadd.s32 %s246, 1
      %s248 = scalar_select %p245, %s246, %s247
      %p251 = pneg %p245
      %p252 = scmp.eq.s32.totalorder %s21, 1
      %p253 = por %p251, %p252
      %p254 = scmp.ne.s32.totalorder %s246, %s249
      %p255 = scmp.eq.s32.totalorder %s21, 0
      %p256 = por %p254, %p255
      %p257 = scmp.ne.s32.totalorder %s246, %s249
      %p258 = scmp.eq.s32.totalorder %s26, 1
      %p259 = por %p257, %p258
      %p260 = scmp.ne.s32.totalorder %s249, %s250
      %p261 = scmp.eq.s32.totalorder %s26, 0
      %p262 = por %p260, %p261
      %p263 = scmp.ne.s32.totalorder %s249, %s250
      %p264 = scmp.eq.s32.totalorder %s27, 1
      %p265 = por %p263, %p264
      %p267 = scmp.ne.s32.totalorder %s250, %s266
      %p268 = scmp.eq.s32.totalorder %s27, 0
      %p269 = por %p267, %p268
      %p270 = scmp.le.s32.totalorder 1, %s21
      %p271 = scmp.lt.s32.totalorder %s21, 3
      %p272 = pnand %p270, %p271
      %p273 = pneg %p272
      // Predicated region
      $region9: #{tpu_custom_call.1} parent=5 // pred_check
        _
      $region10: #{tpu_custom_call.1} parent=5 // pred_check_branch
        %275 = sbr.rel (%p272) target = $region12
      $region11: #{tpu_custom_call.1} parent=5 // pred_region
        %s276 = ssub.s32 %s21, 1
        // Predicated region
        $region13: #{tpu_custom_call.1} parent=11 // pred_check
          %p277 = pneg %p68
        $region14: #{tpu_custom_call.1} parent=11 // pred_check_branch
          %279 = sbr.rel (%p277) target = $region16
        $region15: #{tpu_custom_call.1} parent=11 // pred_region
          %281 = vsyncadd [#allocation5], 0
          %s282 = sshll.u32 %s1, 4
          %s283 = int_to_ptr.hbm [resolvable:$true] %s282
          %s284 = sshll.u32 [#allocation4], 4
          %s285 = int_to_ptr.vmem [resolvable:$true] %s284
          %290 = dma.hbm_to_vmem [thread:$0]  %s283, 18432, %s285, [#allocation5], 128, 128, 8
        $region16: #{tpu_custom_call.1} parent=11 // pred_fallthru
          _
        // Predicated region
        $region17: #{tpu_custom_call.1} parent=11 // pred_check
          %p291 = pneg %p89
        $region18: #{tpu_custom_call.1} parent=11 // pred_check_branch
          %293 = sbr.rel (%p291) target = $region20
        $region19: #{tpu_custom_call.1} parent=11 // pred_region
          _
        $region20: #{tpu_custom_call.1} parent=11 // pred_fallthru
          _
        // Predicated region
        $region21: #{tpu_custom_call.1} parent=11 // pred_check
          %p294 = pneg %p110
        $region22: #{tpu_custom_call.1} parent=11 // pred_check_branch
          %296 = sbr.rel (%p294) target = $region24
        $region23: #{tpu_custom_call.1} parent=11 // pred_region
          _
        $region24: #{tpu_custom_call.1} parent=11 // pred_fallthru
          _
        // Predicated region
        $region25: #{tpu_custom_call.1} parent=11 // pred_check
          %p297 = pneg %p131
        $region26: #{tpu_custom_call.1} parent=11 // pred_check_branch
          %299 = sbr.rel (%p297) target = $region28
        $region27: #{tpu_custom_call.1} parent=11 // pred_region
          %301 = vsyncadd [#allocation8], 0
          %s302 = sshll.u32 %s4, 4
          %s303 = int_to_ptr.hbm [resolvable:$true] %s302
          %s304 = sshll.u32 [#allocation7], 4
          %s305 = int_to_ptr.vmem [resolvable:$true] %s304
          %310 = dma.hbm_to_vmem [thread:$0]  %s303, 18432, %s305, [#allocation8], 128, 128, 8
        $region28: #{tpu_custom_call.1} parent=11 // pred_fallthru
          _
        // Predicated region
        $region29: #{tpu_custom_call.1} parent=11 // pred_check
          %p311 = pneg %p152
        $region30: #{tpu_custom_call.1} parent=11 // pred_check_branch
          %313 = sbr.rel (%p311) target = $region32
        $region31: #{tpu_custom_call.1} parent=11 // pred_region
          _
        $region32: #{tpu_custom_call.1} parent=11 // pred_fallthru
          _
        // Predicated region
        $region33: #{tpu_custom_call.1} parent=11 // pred_check
          %p314 = pneg %p173
        $region34: #{tpu_custom_call.1} parent=11 // pred_check_branch
          %316 = sbr.rel (%p314) target = $region36
        $region35: #{tpu_custom_call.1} parent=11 // pred_region
          _
        $region36: #{tpu_custom_call.1} parent=11 // pred_fallthru
          _
        // Predicated region
        $region37: #{tpu_custom_call.1} parent=11 // pred_check
          %p317 = pneg %p194
        $region38: #{tpu_custom_call.1} parent=11 // pred_check_branch
          %319 = sbr.rel (%p317) target = $region40
        $region39: #{tpu_custom_call.1} parent=11 // pred_region
          _
        $region40: #{tpu_custom_call.1} parent=11 // pred_fallthru
          _
        // Predicated region
        $region41: #{tpu_custom_call.1} parent=11 // pred_check
          %p320 = pneg %p215
        $region42: #{tpu_custom_call.1} parent=11 // pred_check_branch
          %322 = sbr.rel (%p320) target = $region44
        $region43: #{tpu_custom_call.1} parent=11 // pred_region
          _
        $region44: #{tpu_custom_call.1} parent=11 // pred_fallthru
          _
        // Predicated region
        $region45: #{tpu_custom_call.1} parent=11 // pred_check
          %p323 = pneg %p236
        $region46: #{tpu_custom_call.1} parent=11 // pred_check_branch
          %325 = sbr.rel (%p323) target = $region48
        $region47: #{tpu_custom_call.1} parent=11 // pred_region
          _
        $region48: #{tpu_custom_call.1} parent=11 // pred_fallthru
          _
      $region12: #{tpu_custom_call.1} parent=5 // pred_fallthru
        _
      %p326 = scmp.lt.s32.totalorder %s21, 2
      // Predicated region
      $region49: #{tpu_custom_call.1} parent=5 // pred_check
        %p327 = pneg %p326
      $region50: #{tpu_custom_call.1} parent=5 // pred_check_branch
        %329 = sbr.rel (%p327) target = $region52
      $region51: #{tpu_custom_call.1} parent=5 // pred_region
        // Predicated region
        $region53: #{tpu_custom_call.1} parent=51 // pred_check
          %p330 = pneg %p41
        $region54: #{tpu_custom_call.1} parent=51 // pred_check_branch
          %332 = sbr.rel (%p330) target = $region56
        $region55: #{tpu_custom_call.1} parent=51 // pred_region
          %p333 = scmp.lt.s32.totalorder %s21, 1
          %s334 = scalar_select %p333, %s21, 1
          %s335 = smul.addr %s334, 32
          %s336 = smul.addr %s335, 8
          %s337 = scalar_lea.vmem %s0, %s336
        $region56: #{tpu_custom_call.1} parent=51 // pred_fallthru
          _
      $region52: #{tpu_custom_call.1} parent=5 // pred_fallthru
        _
      %p338 = scmp.le.s32.totalorder 1, %s21
      %p339 = scmp.lt.s32.totalorder %s21, 3
      %p340 = pnand %p338, %p339
      %p341 = pneg %p340
      // Predicated region
      $region57: #{tpu_custom_call.1} parent=5 // pred_check
        _
      $region58: #{tpu_custom_call.1} parent=5 // pred_check_branch
        %343 = sbr.rel (%p340) target = $region60
      $region59: #{tpu_custom_call.1} parent=5 // pred_region
        %s344 = ssub.s32 %s21, 1
        // Predicated region
        $region61: #{tpu_custom_call.1} parent=59 // pred_check
          %p345 = pneg %p68
        $region62: #{tpu_custom_call.1} parent=59 // pred_check_branch
          %347 = sbr.rel (%p345) target = $region64
        $region63: #{tpu_custom_call.1} parent=59 // pred_region
          %349 = dma.done [#allocation5], 18432
        $region64: #{tpu_custom_call.1} parent=59 // pred_fallthru
          _
        // Predicated region
        $region65: #{tpu_custom_call.1} parent=59 // pred_check
          %p350 = pneg %p131
        $region66: #{tpu_custom_call.1} parent=59 // pred_check_branch
          %352 = sbr.rel (%p350) target = $region68
        $region67: #{tpu_custom_call.1} parent=59 // pred_region
          %354 = dma.done [#allocation8], 18432
        $region68: #{tpu_custom_call.1} parent=59 // pred_fallthru
          _
        %p355 = scmp.lt.s32.totalorder %s26, 1
        %s356 = scalar_select %p355, %s26, 1
        %s357 = smul.addr %s356, 32
        %s358 = smul.addr %s357, 8
        %s359 = scalar_lea.vmem %s0, %s358
        %p360 = pneg %p47
        %p361 = pneg %p44
        %p362 = pneg %p68
        %p363 = pneg %p65
        %p364 = pneg %p89
        %p365 = pneg %p86
        %p366 = pneg %p110
        %p367 = pneg %p107
        %p368 = pneg %p131
        %p369 = pneg %p128
        %p370 = pneg %p152
        %p371 = pneg %p149
        %p372 = pneg %p173
        %p373 = pneg %p170
        %p374 = pneg %p194
        %p375 = pneg %p191
        %p376 = pneg %p215
        %p377 = pneg %p212
        %p378 = pneg %p236
        %p379 = pneg %p233
        %p380 = pneg %p262
        %p381 = pneg %p259
        %s382 = sand.u32 %s249, 1
        %s383 = scalar_lea.sflag [#allocation6], %s382
        %s384 = sand.u32 %s249, 1
        %s385 = smul.addr %s384, 64
        %s386 = scalar_lea.vmem [#allocation9], %s385
        %p387 = scmp.lt.s32.totalorder %s26, 1
        %s388 = scalar_select %p387, %s26, 1
        %s389 = smul.addr %s388, 32
        %s390 = smul.addr %s389, 8
        %s391 = scalar_lea.vmem %s0, %s390
        %392 = vst [vmem:[#allocation2] sm:$0xff] 0.0
        %393 = vst [vmem:[#allocation2 + $0x8] sm:$0xff] 0.0
        %394 = vst [vmem:[#allocation2 + $0x10] sm:$0x3] 0.0
        %395 = vst [vmem:[#allocation2 + $0x18] sm:$0xff] 0.0
        %396 = vst [vmem:[#allocation2 + $0x20] sm:$0xff] 0.0
        %397 = vst [vmem:[#allocation2 + $0x28] sm:$0x3] 0.0
        %398 = vst [vmem:[#allocation2 + $0x30] sm:$0xff] 0.0
        %399 = vst [vmem:[#allocation2 + $0x38] sm:$0xff] 0.0
        %400 = vst [vmem:[#allocation2 + $0x40] sm:$0x3] 0.0
        %401 = vst [vmem:[#allocation2 + $0x48] sm:$0xff] 0.0
        %402 = vst [vmem:[#allocation2 + $0x50] sm:$0xff] 0.0
        %403 = vst [vmem:[#allocation2 + $0x58] sm:$0x3] 0.0
        %404 = vst [vmem:[#allocation2 + $0x60] sm:$0xff] 0.0
        %405 = vst [vmem:[#allocation2 + $0x68] sm:$0xff] 0.0
        %406 = vst [vmem:[#allocation2 + $0x70] sm:$0x3] 0.0
        %407 = vst [vmem:[#allocation2 + $0x78] sm:$0xff] 0.0
        %408 = vst [vmem:[#allocation2 + $0x80] sm:$0xff] 0.0
        %409 = vst [vmem:[#allocation2 + $0x88] sm:$0x3] 0.0
        %410 = vst [vmem:[#allocation2 + $0x90] sm:$0xff] 0.0
        %411 = vst [vmem:[#allocation2 + $0x98] sm:$0xff] 0.0
        %412 = vst [vmem:[#allocation2 + $0xa0] sm:$0x3] 0.0
        %413 = vst [vmem:[#allocation2 + $0xa8] sm:$0xff] 0.0
        %414 = vst [vmem:[#allocation2 + $0xb0] sm:$0xff] 0.0
        %415 = vst [vmem:[#allocation2 + $0xb8] sm:$0x3] 0.0
        %416 = vst [vmem:[#allocation2 + $0xc0] sm:$0xff] 0.0
        %417 = vst [vmem:[#allocation2 + $0xc8] sm:$0xff] 0.0
        %418 = vst [vmem:[#allocation2 + $0xd0] sm:$0x3] 0.0
        %419 = vst [vmem:[#allocation2 + $0xd8] sm:$0xff] 0.0
        %420 = vst [vmem:[#allocation2 + $0xe0] sm:$0xff] 0.0
        %421 = vst [vmem:[#allocation2 + $0xe8] sm:$0x3] 0.0
        %422 = vst [vmem:[#allocation2 + $0xf0] sm:$0xff] 0.0
        %423 = vst [vmem:[#allocation2 + $0xf8] sm:$0xff] 0.0
        %424 = vst [vmem:[#allocation2 + $0x100] sm:$0x3] 0.0
        %425 = vst [vmem:[#allocation2 + $0x108] sm:$0xff] 0.0
        %426 = vst [vmem:[#allocation2 + $0x110] sm:$0xff] 0.0
        %427 = vst [vmem:[#allocation2 + $0x118] sm:$0x3] 0.0
        %428 = vst [vmem:[#allocation2 + $0x120] sm:$0xff] 0.0
        %429 = vst [vmem:[#allocation2 + $0x128] sm:$0xff] 0.0
        %430 = vst [vmem:[#allocation2 + $0x130] sm:$0x3] 0.0
        %431 = vst [vmem:[#allocation2 + $0x138] sm:$0xff] 0.0
        %432 = vst [vmem:[#allocation2 + $0x140] sm:$0xff] 0.0
        %433 = vst [vmem:[#allocation2 + $0x148] sm:$0x3] 0.0
        %434 = vst [vmem:[#allocation2 + $0x150] sm:$0xff] 0.0
        %435 = vst [vmem:[#allocation2 + $0x158] sm:$0xff] 0.0
        %436 = vst [vmem:[#allocation2 + $0x160] sm:$0x3] 0.0
        %437 = vst [vmem:[#allocation2 + $0x168] sm:$0xff] 0.0
        %438 = vst [vmem:[#allocation2 + $0x170] sm:$0xff] 0.0
        %439 = vst [vmem:[#allocation2 + $0x178] sm:$0x3] 0.0
        %440 = vst [vmem:[#allocation2 + $0x180] sm:$0xff] 0.0
        %441 = vst [vmem:[#allocation2 + $0x188] sm:$0xff] 0.0
        %442 = vst [vmem:[#allocation2 + $0x190] sm:$0x3] 0.0
        %443 = vst [vmem:[#allocation2 + $0x198] sm:$0xff] 0.0
        %444 = vst [vmem:[#allocation2 + $0x1a0] sm:$0xff] 0.0
        %445 = vst [vmem:[#allocation2 + $0x1a8] sm:$0x3] 0.0
        %v446 = vld [vmem:[%s391] sm:$0xff]
        %v447 = vld [vmem:[%s391 + $0x8] sm:$0xff]
        %v448 = vld [vmem:[%s391 + $0x10] sm:$0xff]
        %v449 = vld [vmem:[%s391 + $0x18] sm:$0xff]
        %v450 = vld [vmem:[%s391 + $0x20] sm:$0xff]
        %v451 = vld [vmem:[%s391 + $0x28] sm:$0xff]
        %v452 = vld [vmem:[%s391 + $0x30] sm:$0xff]
        %v453 = vld [vmem:[%s391 + $0x38] sm:$0xff]
        %v454 = vld [vmem:[%s391 + $0x40] sm:$0xff]
        %v455 = vld [vmem:[%s391 + $0x48] sm:$0xff]
        %v456 = vld [vmem:[%s391 + $0x50] sm:$0xff]
        %v457 = vld [vmem:[%s391 + $0x58] sm:$0xff]
        %v458 = vld [vmem:[%s391 + $0x60] sm:$0xff]
        %v459 = vld [vmem:[%s391 + $0x68] sm:$0xff]
        %v460 = vld [vmem:[%s391 + $0x70] sm:$0xff]
        %v461 = vld [vmem:[%s391 + $0x78] sm:$0xff]
        %v462 = vld [vmem:[%s391 + $0x80] sm:$0xff]
        %v463 = vld [vmem:[%s391 + $0x88] sm:$0xff]
        %v464 = vld [vmem:[%s391 + $0x90] sm:$0xff]
        %v465 = vld [vmem:[%s391 + $0x98] sm:$0xff]
        %v466 = vld [vmem:[%s391 + $0xa0] sm:$0xff]
        %v467 = vld [vmem:[%s391 + $0xa8] sm:$0xff]
        %v468 = vld [vmem:[%s391 + $0xb0] sm:$0xff]
        %v469 = vld [vmem:[%s391 + $0xb8] sm:$0xff]
        %v470 = vld [vmem:[%s391 + $0xc0] sm:$0xff]
        %v471 = vld [vmem:[%s391 + $0xc8] sm:$0xff]
        %v472 = vld [vmem:[%s391 + $0xd0] sm:$0xff]
        %v473 = vld [vmem:[%s391 + $0xd8] sm:$0xff]
        %v474 = vld [vmem:[%s391 + $0xe0] sm:$0xff]
        %v475 = vld [vmem:[%s391 + $0xe8] sm:$0xff]
        %v476 = vld [vmem:[%s391 + $0xf0] sm:$0xff]
        %v477 = vld [vmem:[%s391 + $0xf8] sm:$0xff]
        %s478 = scalar_lea.vmem [#allocation2], 24
        %vm479 = vcmask 31744
        %480 = vst.msk [vmem:[%s478 + $0x1] sm:$0xff] %vm479, %v446
        %481 = vst.msk [vmem:[%s478 + $0x9] sm:$0xff] %vm479, %v447
        %482 = vst.msk [vmem:[%s478 + $0x19] sm:$0xff] %vm479, %v448
        %483 = vst.msk [vmem:[%s478 + $0x21] sm:$0xff] %vm479, %v449
        %484 = vst.msk [vmem:[%s478 + $0x31] sm:$0xff] %vm479, %v450
        %485 = vst.msk [vmem:[%s478 + $0x39] sm:$0xff] %vm479, %v451
        %486 = vst.msk [vmem:[%s478 + $0x49] sm:$0xff] %vm479, %v452
        %487 = vst.msk [vmem:[%s478 + $0x51] sm:$0xff] %vm479, %v453
        %488 = vst.msk [vmem:[%s478 + $0x61] sm:$0xff] %vm479, %v454
        %489 = vst.msk [vmem:[%s478 + $0x69] sm:$0xff] %vm479, %v455
        %490 = vst.msk [vmem:[%s478 + $0x79] sm:$0xff] %vm479, %v456
        %491 = vst.msk [vmem:[%s478 + $0x81] sm:$0xff] %vm479, %v457
        %492 = vst.msk [vmem:[%s478 + $0x91] sm:$0xff] %vm479, %v458
        %493 = vst.msk [vmem:[%s478 + $0x99] sm:$0xff] %vm479, %v459
        %494 = vst.msk [vmem:[%s478 + $0xa9] sm:$0xff] %vm479, %v460
        %495 = vst.msk [vmem:[%s478 + $0xb1] sm:$0xff] %vm479, %v461
        %496 = vst.msk [vmem:[%s478 + $0xc1] sm:$0xff] %vm479, %v462
        %497 = vst.msk [vmem:[%s478 + $0xc9] sm:$0xff] %vm479, %v463
        %498 = vst.msk [vmem:[%s478 + $0xd9] sm:$0xff] %vm479, %v464
        %499 = vst.msk [vmem:[%s478 + $0xe1] sm:$0xff] %vm479, %v465
        %500 = vst.msk [vmem:[%s478 + $0xf1] sm:$0xff] %vm479, %v466
        %501 = vst.msk [vmem:[%s478 + $0xf9] sm:$0xff] %vm479, %v467
        %502 = vst.msk [vmem:[%s478 + $0x109] sm:$0xff] %vm479, %v468
        %503 = vst.msk [vmem:[%s478 + $0x111] sm:$0xff] %vm479, %v469
        %504 = vst.msk [vmem:[%s478 + $0x121] sm:$0xff] %vm479, %v470
        %505 = vst.msk [vmem:[%s478 + $0x129] sm:$0xff] %vm479, %v471
        %506 = vst.msk [vmem:[%s478 + $0x139] sm:$0xff] %vm479, %v472
        %507 = vst.msk [vmem:[%s478 + $0x141] sm:$0xff] %vm479, %v473
        %508 = vst.msk [vmem:[%s478 + $0x151] sm:$0xff] %vm479, %v474
        %509 = vst.msk [vmem:[%s478 + $0x159] sm:$0xff] %vm479, %v475
        %510 = vst.msk [vmem:[%s478 + $0x169] sm:$0xff] %vm479, %v476
        %511 = vst.msk [vmem:[%s478 + $0x171] sm:$0xff] %vm479, %v477
        %v512 = vld [vmem:[#allocation2] ss:$2 sm:$0xff]
        %s513 = scalar_lea.vmem [#allocation2], 48
        %v514 = vld [vmem:[%s513] ss:$2 sm:$0xff]
        %s515 = scalar_lea.vmem [#allocation2], 96
        %v516 = vld [vmem:[%s515] ss:$2 sm:$0xff]
        %s517 = scalar_lea.vmem [#allocation2], 144
        %v518 = vld [vmem:[%s517] ss:$2 sm:$0xff]
        %s519 = scalar_lea.vmem [#allocation2], 192
        %v520 = vld [vmem:[%s519] ss:$2 sm:$0xff]
        %s521 = scalar_lea.vmem [#allocation2], 240
        %v522 = vld [vmem:[%s521] ss:$2 sm:$0xff]
        %s523 = scalar_lea.vmem [#allocation2], 288
        %v524 = vld [vmem:[%s523] ss:$2 sm:$0xff]
        %s525 = scalar_lea.vmem [#allocation2], 336
        %v526 = vld [vmem:[%s525] ss:$2 sm:$0xff]
        %s527 = scalar_lea.vmem [#allocation2], 1
        %v528 = vld [vmem:[%s527] ss:$2 sm:$0xff]
        %s529 = scalar_lea.vmem [#allocation2], 49
        %v530 = vld [vmem:[%s529] ss:$2 sm:$0xff]
        %s531 = scalar_lea.vmem [#allocation2], 97
        %v532 = vld [vmem:[%s531] ss:$2 sm:$0xff]
        %s533 = scalar_lea.vmem [#allocation2], 145
        %v534 = vld [vmem:[%s533] ss:$2 sm:$0xff]
        %s535 = scalar_lea.vmem [#allocation2], 193
        %v536 = vld [vmem:[%s535] ss:$2 sm:$0xff]
        %s537 = scalar_lea.vmem [#allocation2], 241
        %v538 = vld [vmem:[%s537] ss:$2 sm:$0xff]
        %s539 = scalar_lea.vmem [#allocation2], 289
        %v540 = vld [vmem:[%s539] ss:$2 sm:$0xff]
        %s541 = scalar_lea.vmem [#allocation2], 337
        %v542 = vld [vmem:[%s541] ss:$2 sm:$0xff]
        %s543 = scalar_lea.vmem [#allocation2], 2
        %v544 = vld [vmem:[%s543] ss:$2 sm:$0xff]
        %s545 = scalar_lea.vmem [#allocation2], 50
        %v546 = vld [vmem:[%s545] ss:$2 sm:$0xff]
        %s547 = scalar_lea.vmem [#allocation2], 98
        %v548 = vld [vmem:[%s547] ss:$2 sm:$0xff]
        %s549 = scalar_lea.vmem [#allocation2], 146
        %v550 = vld [vmem:[%s549] ss:$2 sm:$0xff]
        %s551 = scalar_lea.vmem [#allocation2], 194
        %v552 = vld [vmem:[%s551] ss:$2 sm:$0xff]
        %s553 = scalar_lea.vmem [#allocation2], 242
        %v554 = vld [vmem:[%s553] ss:$2 sm:$0xff]
        %s555 = scalar_lea.vmem [#allocation2], 290
        %v556 = vld [vmem:[%s555] ss:$2 sm:$0xff]
        %s557 = scalar_lea.vmem [#allocation2], 338
        %v558 = vld [vmem:[%s557] ss:$2 sm:$0xff]
        %v559 = vld [vmem:[%s478] ss:$2 sm:$0xff]
        %s560 = scalar_lea.vmem %s478, 48 [#allocation2]
        %v561 = vld [vmem:[%s560] ss:$2 sm:$0xff]
        %s562 = scalar_lea.vmem %s478, 96 [#allocation2]
        %v563 = vld [vmem:[%s562] ss:$2 sm:$0xff]
        %s564 = scalar_lea.vmem %s478, 144 [#allocation2]
        %v565 = vld [vmem:[%s564] ss:$2 sm:$0xff]
        %s566 = scalar_lea.vmem %s478, 192 [#allocation2]
        %v567 = vld [vmem:[%s566] ss:$2 sm:$0xff]
        %s568 = scalar_lea.vmem %s478, 240 [#allocation2]
        %v569 = vld [vmem:[%s568] ss:$2 sm:$0xff]
        %s570 = scalar_lea.vmem %s478, 288 [#allocation2]
        %v571 = vld [vmem:[%s570] ss:$2 sm:$0xff]
        %s572 = scalar_lea.vmem %s478, 336 [#allocation2]
        %v573 = vld [vmem:[%s572] ss:$2 sm:$0xff]
        %s574 = scalar_lea.vmem %s478, 1 [#allocation2]
        %v575 = vld [vmem:[%s574] ss:$2 sm:$0xff]
        %s576 = scalar_lea.vmem %s478, 49 [#allocation2]
        %v577 = vld [vmem:[%s576] ss:$2 sm:$0xff]
        %s578 = scalar_lea.vmem %s478, 97 [#allocation2]
        %v579 = vld [vmem:[%s578] ss:$2 sm:$0xff]
        %s580 = scalar_lea.vmem %s478, 145 [#allocation2]
        %v581 = vld [vmem:[%s580] ss:$2 sm:$0xff]
        %s582 = scalar_lea.vmem %s478, 193 [#allocation2]
        %v583 = vld [vmem:[%s582] ss:$2 sm:$0xff]
        %s584 = scalar_lea.vmem %s478, 241 [#allocation2]
        %v585 = vld [vmem:[%s584] ss:$2 sm:$0xff]
        %s586 = scalar_lea.vmem %s478, 289 [#allocation2]
        %v587 = vld [vmem:[%s586] ss:$2 sm:$0xff]
        %s588 = scalar_lea.vmem %s478, 337 [#allocation2]
        %v589 = vld [vmem:[%s588] ss:$2 sm:$0xff]
        %s590 = scalar_lea.vmem %s478, 2 [#allocation2]
        %v591 = vld [vmem:[%s590] ss:$2 sm:$0xff]
        %s592 = scalar_lea.vmem %s478, 50 [#allocation2]
        %v593 = vld [vmem:[%s592] ss:$2 sm:$0xff]
        %s594 = scalar_lea.vmem %s478, 98 [#allocation2]
        %v595 = vld [vmem:[%s594] ss:$2 sm:$0xff]
        %s596 = scalar_lea.vmem %s478, 146 [#allocation2]
        %v597 = vld [vmem:[%s596] ss:$2 sm:$0xff]
        %s598 = scalar_lea.vmem %s478, 194 [#allocation2]
        %v599 = vld [vmem:[%s598] ss:$2 sm:$0xff]
        %s600 = scalar_lea.vmem %s478, 242 [#allocation2]
        %v601 = vld [vmem:[%s600] ss:$2 sm:$0xff]
        %s602 = scalar_lea.vmem %s478, 290 [#allocation2]
        %v603 = vld [vmem:[%s602] ss:$2 sm:$0xff]
        %s604 = scalar_lea.vmem %s478, 338 [#allocation2]
        %v605 = vld [vmem:[%s604] ss:$2 sm:$0xff]
        %s606 = scalar_lea.vmem [#allocation2], 48
        %v607 = vld [vmem:[%s606] ss:$2 sm:$0xff]
        %s608 = scalar_lea.vmem %s606, 48 [#allocation2]
        %v609 = vld [vmem:[%s608] ss:$2 sm:$0xff]
        %s610 = scalar_lea.vmem %s606, 96 [#allocation2]
        %v611 = vld [vmem:[%s610] ss:$2 sm:$0xff]
        %s612 = scalar_lea.vmem %s606, 144 [#allocation2]
        %v613 = vld [vmem:[%s612] ss:$2 sm:$0xff]
        %s614 = scalar_lea.vmem %s606, 192 [#allocation2]
        %v615 = vld [vmem:[%s614] ss:$2 sm:$0xff]
        %s616 = scalar_lea.vmem %s606, 240 [#allocation2]
        %v617 = vld [vmem:[%s616] ss:$2 sm:$0xff]
        %s618 = scalar_lea.vmem %s606, 288 [#allocation2]
        %v619 = vld [vmem:[%s618] ss:$2 sm:$0xff]
        %s620 = scalar_lea.vmem %s606, 336 [#allocation2]
        %v621 = vld [vmem:[%s620] ss:$2 sm:$0xff]
        %s622 = scalar_lea.vmem %s606, 1 [#allocation2]
        %v623 = vld [vmem:[%s622] ss:$2 sm:$0xff]
        %s624 = scalar_lea.vmem %s606, 49 [#allocation2]
        %v625 = vld [vmem:[%s624] ss:$2 sm:$0xff]
        %s626 = scalar_lea.vmem %s606, 97 [#allocation2]
        %v627 = vld [vmem:[%s626] ss:$2 sm:$0xff]
        %s628 = scalar_lea.vmem %s606, 145 [#allocation2]
        %v629 = vld [vmem:[%s628] ss:$2 sm:$0xff]
        %s630 = scalar_lea.vmem %s606, 193 [#allocation2]
        %v631 = vld [vmem:[%s630] ss:$2 sm:$0xff]
        %s632 = scalar_lea.vmem %s606, 241 [#allocation2]
        %v633 = vld [vmem:[%s632] ss:$2 sm:$0xff]
        %s634 = scalar_lea.vmem %s606, 289 [#allocation2]
        %v635 = vld [vmem:[%s634] ss:$2 sm:$0xff]
        %s636 = scalar_lea.vmem %s606, 337 [#allocation2]
        %v637 = vld [vmem:[%s636] ss:$2 sm:$0xff]
        %s638 = scalar_lea.vmem %s606, 2 [#allocation2]
        %v639 = vld [vmem:[%s638] ss:$2 sm:$0xff]
        %s640 = scalar_lea.vmem %s606, 50 [#allocation2]
        %v641 = vld [vmem:[%s640] ss:$2 sm:$0xff]
        %s642 = scalar_lea.vmem %s606, 98 [#allocation2]
        %v643 = vld [vmem:[%s642] ss:$2 sm:$0xff]
        %s644 = scalar_lea.vmem %s606, 146 [#allocation2]
        %v645 = vld [vmem:[%s644] ss:$2 sm:$0xff]
        %s646 = scalar_lea.vmem %s606, 194 [#allocation2]
        %v647 = vld [vmem:[%s646] ss:$2 sm:$0xff]
        %s648 = scalar_lea.vmem %s606, 242 [#allocation2]
        %v649 = vld [vmem:[%s648] ss:$2 sm:$0xff]
        %s650 = scalar_lea.vmem %s606, 290 [#allocation2]
        %v651 = vld [vmem:[%s650] ss:$2 sm:$0xff]
        %s652 = scalar_lea.vmem %s606, 338 [#allocation2]
        %v653 = vld [vmem:[%s652] ss:$2 sm:$0xff]
        %v654 = vld [vmem:[#allocation4] sm:$0xff]
        %v655 = vld [vmem:[#allocation4 + $0x8] sm:$0xff]
        %v656 = vld [vmem:[#allocation4 + $0x10] sm:$0xff]
        %v657 = vld [vmem:[#allocation4 + $0x18] sm:$0xff]
        %v658 = vld [vmem:[#allocation4 + $0x20] sm:$0xff]
        %v659 = vld [vmem:[#allocation4 + $0x28] sm:$0xff]
        %v660 = vld [vmem:[#allocation4 + $0x30] sm:$0xff]
        %v661 = vld [vmem:[#allocation4 + $0x38] sm:$0xff]
        %v662 = vld [vmem:[#allocation4 + $0x40] sm:$0xff]
        %v663 = vld [vmem:[#allocation4 + $0x48] sm:$0xff]
        %v664 = vld [vmem:[#allocation4 + $0x50] sm:$0xff]
        %v665 = vld [vmem:[#allocation4 + $0x58] sm:$0xff]
        %v666 = vld [vmem:[#allocation4 + $0x60] sm:$0xff]
        %v667 = vld [vmem:[#allocation4 + $0x68] sm:$0xff]
        %v668 = vld [vmem:[#allocation4 + $0x70] sm:$0xff]
        %v669 = vld [vmem:[#allocation4 + $0x78] sm:$0xff]
        %v670 = vld [vmem:[#allocation4 + $0x80] sm:$0xff]
        %v671 = vld [vmem:[#allocation4 + $0x88] sm:$0xff]
        %v672 = vld [vmem:[#allocation4 + $0x90] sm:$0xff]
        %v673 = vld [vmem:[#allocation4 + $0x98] sm:$0xff]
        %v674 = vld [vmem:[#allocation4 + $0xa0] sm:$0xff]
        %v675 = vld [vmem:[#allocation4 + $0xa8] sm:$0xff]
        %v676 = vld [vmem:[#allocation4 + $0xb0] sm:$0xff]
        %v677 = vld [vmem:[#allocation4 + $0xb8] sm:$0xff]
        %v678 = vld [vmem:[#allocation4 + $0xc0] sm:$0xff]
        %v679 = vld [vmem:[#allocation4 + $0xc8] sm:$0xff]
        %v680 = vld [vmem:[#allocation4 + $0xd0] sm:$0xff]
        %v681 = vld [vmem:[#allocation4 + $0xd8] sm:$0xff]
        %v682 = vld [vmem:[#allocation4 + $0xe0] sm:$0xff]
        %v683 = vld [vmem:[#allocation4 + $0xe8] sm:$0xff]
        %v684 = vld [vmem:[#allocation4 + $0xf0] sm:$0xff]
        %v685 = vld [vmem:[#allocation4 + $0xf8] sm:$0xff]
        %v686 = vld [vmem:[#allocation4 + $0x100] sm:$0xff]
        %v687 = vld [vmem:[#allocation4 + $0x108] sm:$0xff]
        %v688 = vld [vmem:[#allocation4 + $0x110] sm:$0xff]
        %v689 = vld [vmem:[#allocation4 + $0x118] sm:$0xff]
        %v690 = vld [vmem:[#allocation4 + $0x120] sm:$0xff]
        %v691 = vld [vmem:[#allocation4 + $0x128] sm:$0xff]
        %v692 = vld [vmem:[#allocation4 + $0x130] sm:$0xff]
        %v693 = vld [vmem:[#allocation4 + $0x138] sm:$0xff]
        %v694 = vld [vmem:[#allocation4 + $0x140] sm:$0xff]
        %v695 = vld [vmem:[#allocation4 + $0x148] sm:$0xff]
        %v696 = vld [vmem:[#allocation4 + $0x150] sm:$0xff]
        %v697 = vld [vmem:[#allocation4 + $0x158] sm:$0xff]
        %v698 = vld [vmem:[#allocation4 + $0x160] sm:$0xff]
        %v699 = vld [vmem:[#allocation4 + $0x168] sm:$0xff]
        %v700 = vld [vmem:[#allocation4 + $0x170] sm:$0xff]
        %v701 = vld [vmem:[#allocation4 + $0x178] sm:$0xff]
        %v702 = vld [vmem:[#allocation4 + $0x180] sm:$0xff]
        %v703 = vld [vmem:[#allocation4 + $0x188] sm:$0xff]
        %v704 = vld [vmem:[#allocation4 + $0x190] sm:$0xff]
        %v705 = vld [vmem:[#allocation4 + $0x198] sm:$0xff]
        %v706 = vld [vmem:[#allocation4 + $0x1a0] sm:$0xff]
        %v707 = vld [vmem:[#allocation4 + $0x1a8] sm:$0xff]
        %v708 = vld [vmem:[#allocation4 + $0x1b0] sm:$0xff]
        %v709 = vld [vmem:[#allocation4 + $0x1b8] sm:$0xff]
        %v710 = vld [vmem:[#allocation4 + $0x1c0] sm:$0xff]
        %v711 = vld [vmem:[#allocation4 + $0x1c8] sm:$0xff]
        %v712 = vld [vmem:[#allocation4 + $0x1d0] sm:$0xff]
        %v713 = vld [vmem:[#allocation4 + $0x1d8] sm:$0xff]
        %v714 = vld [vmem:[#allocation4 + $0x1e0] sm:$0xff]
        %v715 = vld [vmem:[#allocation4 + $0x1e8] sm:$0xff]
        %v716 = vld [vmem:[#allocation4 + $0x1f0] sm:$0xff]
        %v717 = vld [vmem:[#allocation4 + $0x1f8] sm:$0xff]
        %v718 = vld [vmem:[#allocation4 + $0x200] sm:$0xff]
        %v719 = vld [vmem:[#allocation4 + $0x208] sm:$0xff]
        %v720 = vld [vmem:[#allocation4 + $0x210] sm:$0xff]
        %v721 = vld [vmem:[#allocation4 + $0x218] sm:$0xff]
        %v722 = vld [vmem:[#allocation4 + $0x220] sm:$0xff]
        %v723 = vld [vmem:[#allocation4 + $0x228] sm:$0xff]
        %v724 = vld [vmem:[#allocation4 + $0x230] sm:$0xff]
        %v725 = vld [vmem:[#allocation4 + $0x238] sm:$0xff]
        %v726 = vld [vmem:[#allocation4 + $0x240] sm:$0xff]
        %v727 = vld [vmem:[#allocation4 + $0x248] sm:$0xff]
        %v728 = vld [vmem:[#allocation4 + $0x250] sm:$0xff]
        %v729 = vld [vmem:[#allocation4 + $0x258] sm:$0xff]
        %v730 = vld [vmem:[#allocation4 + $0x260] sm:$0xff]
        %v731 = vld [vmem:[#allocation4 + $0x268] sm:$0xff]
        %v732 = vld [vmem:[#allocation4 + $0x270] sm:$0xff]
        %v733 = vld [vmem:[#allocation4 + $0x278] sm:$0xff]
        %v734 = vld [vmem:[#allocation4 + $0x280] sm:$0xff]
        %v735 = vld [vmem:[#allocation4 + $0x288] sm:$0xff]
        %v736 = vld [vmem:[#allocation4 + $0x290] sm:$0xff]
        %v737 = vld [vmem:[#allocation4 + $0x298] sm:$0xff]
        %v738 = vld [vmem:[#allocation4 + $0x2a0] sm:$0xff]
        %v739 = vld [vmem:[#allocation4 + $0x2a8] sm:$0xff]
        %v740 = vld [vmem:[#allocation4 + $0x2b0] sm:$0xff]
        %v741 = vld [vmem:[#allocation4 + $0x2b8] sm:$0xff]
        %v742 = vld [vmem:[#allocation4 + $0x2c0] sm:$0xff]
        %v743 = vld [vmem:[#allocation4 + $0x2c8] sm:$0xff]
        %v744 = vld [vmem:[#allocation4 + $0x2d0] sm:$0xff]
        %v745 = vld [vmem:[#allocation4 + $0x2d8] sm:$0xff]
        %v746 = vld [vmem:[#allocation4 + $0x2e0] sm:$0xff]
        %v747 = vld [vmem:[#allocation4 + $0x2e8] sm:$0xff]
        %v748 = vld [vmem:[#allocation4 + $0x2f0] sm:$0xff]
        %v749 = vld [vmem:[#allocation4 + $0x2f8] sm:$0xff]
        %v750 = vld [vmem:[#allocation4 + $0x300] sm:$0xff]
        %v751 = vld [vmem:[#allocation4 + $0x308] sm:$0xff]
        %v752 = vld [vmem:[#allocation4 + $0x310] sm:$0xff]
        %v753 = vld [vmem:[#allocation4 + $0x318] sm:$0xff]
        %v754 = vld [vmem:[#allocation4 + $0x320] sm:$0xff]
        %v755 = vld [vmem:[#allocation4 + $0x328] sm:$0xff]
        %v756 = vld [vmem:[#allocation4 + $0x330] sm:$0xff]
        %v757 = vld [vmem:[#allocation4 + $0x338] sm:$0xff]
        %v758 = vld [vmem:[#allocation4 + $0x340] sm:$0xff]
        %v759 = vld [vmem:[#allocation4 + $0x348] sm:$0xff]
        %v760 = vld [vmem:[#allocation4 + $0x350] sm:$0xff]
        %v761 = vld [vmem:[#allocation4 + $0x358] sm:$0xff]
        %v762 = vld [vmem:[#allocation4 + $0x360] sm:$0xff]
        %v763 = vld [vmem:[#allocation4 + $0x368] sm:$0xff]
        %v764 = vld [vmem:[#allocation4 + $0x370] sm:$0xff]
        %v765 = vld [vmem:[#allocation4 + $0x378] sm:$0xff]
        %v766 = vld [vmem:[#allocation4 + $0x380] sm:$0xff]
        %v767 = vld [vmem:[#allocation4 + $0x388] sm:$0xff]
        %v768 = vld [vmem:[#allocation4 + $0x390] sm:$0xff]
        %v769 = vld [vmem:[#allocation4 + $0x398] sm:$0xff]
        %v770 = vld [vmem:[#allocation4 + $0x3a0] sm:$0xff]
        %v771 = vld [vmem:[#allocation4 + $0x3a8] sm:$0xff]
        %v772 = vld [vmem:[#allocation4 + $0x3b0] sm:$0xff]
        %v773 = vld [vmem:[#allocation4 + $0x3b8] sm:$0xff]
        %v774 = vld [vmem:[#allocation4 + $0x3c0] sm:$0xff]
        %v775 = vld [vmem:[#allocation4 + $0x3c8] sm:$0xff]
        %v776 = vld [vmem:[#allocation4 + $0x3d0] sm:$0xff]
        %v777 = vld [vmem:[#allocation4 + $0x3d8] sm:$0xff]
        %v778 = vld [vmem:[#allocation4 + $0x3e0] sm:$0xff]
        %v779 = vld [vmem:[#allocation4 + $0x3e8] sm:$0xff]
        %v780 = vld [vmem:[#allocation4 + $0x3f0] sm:$0xff]
        %v781 = vld [vmem:[#allocation4 + $0x3f8] sm:$0xff]
        %v782 = vld [vmem:[#allocation4 + $0x400] sm:$0xff]
        %v783 = vld [vmem:[#allocation4 + $0x408] sm:$0xff]
        %v784 = vld [vmem:[#allocation4 + $0x410] sm:$0xff]
        %v785 = vld [vmem:[#allocation4 + $0x418] sm:$0xff]
        %v786 = vld [vmem:[#allocation4 + $0x420] sm:$0xff]
        %v787 = vld [vmem:[#allocation4 + $0x428] sm:$0xff]
        %v788 = vld [vmem:[#allocation4 + $0x430] sm:$0xff]
        %v789 = vld [vmem:[#allocation4 + $0x438] sm:$0xff]
        %v790 = vld [vmem:[#allocation4 + $0x440] sm:$0xff]
        %v791 = vld [vmem:[#allocation4 + $0x448] sm:$0xff]
        %v792 = vld [vmem:[#allocation4 + $0x450] sm:$0xff]
        %v793 = vld [vmem:[#allocation4 + $0x458] sm:$0xff]
        %v794 = vld [vmem:[#allocation4 + $0x460] sm:$0xff]
        %v795 = vld [vmem:[#allocation4 + $0x468] sm:$0xff]
        %v796 = vld [vmem:[#allocation4 + $0x470] sm:$0xff]
        %v797 = vld [vmem:[#allocation4 + $0x478] sm:$0xff]
        %798 = vmatpush.msra.mxu0 %v669
        %799 = vmatpush.msra.mxu0 %v668
        %800 = vmatpush.msra.mxu0 %v667
        %801 = vmatpush.msra.mxu0 %v666
        %802 = vmatpush.msra.mxu0 %v665
        %803 = vmatpush.msra.mxu0 %v664
        %804 = vmatpush.msra.mxu0 %v663
        %805 = vmatpush.msra.mxu0 %v662
        %806 = vmatpush.msra.mxu0 %v661
        %807 = vmatpush.msra.mxu0 %v660
        %808 = vmatpush.msra.mxu0 %v659
        %809 = vmatpush.msra.mxu0 %v658
        %810 = vmatpush.msra.mxu0 %v657
        %811 = vmatpush.msra.mxu0 %v656
        %812 = vmatpush.msra.mxu0 %v655
        %813 = vmatpush.msra.mxu0 %v654
        %814 = vmatmul.f32.gmra.mxu0 %v512
        %v815 = vpop.f32.mrf.mxu0
        %v816 = vadd.f32 0.0, %v815
        %817 = vmatmul.f32.gmra.mxu0 %v514
        %v818 = vpop.f32.mrf.mxu0
        %v819 = vadd.f32 0.0, %v818
        %820 = vmatmul.f32.gmra.mxu0 %v516
        %v821 = vpop.f32.mrf.mxu0
        %v822 = vadd.f32 0.0, %v821
        %823 = vmatmul.f32.gmra.mxu0 %v518
        %v824 = vpop.f32.mrf.mxu0
        %v825 = vadd.f32 0.0, %v824
        %826 = vmatmul.f32.gmra.mxu0 %v520
        %v827 = vpop.f32.mrf.mxu0
        %v828 = vadd.f32 0.0, %v827
        %829 = vmatmul.f32.gmra.mxu0 %v522
        %v830 = vpop.f32.mrf.mxu0
        %v831 = vadd.f32 0.0, %v830
        %832 = vmatmul.f32.gmra.mxu0 %v524
        %v833 = vpop.f32.mrf.mxu0
        %v834 = vadd.f32 0.0, %v833
        %835 = vmatmul.f32.gmra.mxu0 %v526
        %v836 = vpop.f32.mrf.mxu0
        %v837 = vadd.f32 0.0, %v836
        %838 = vdwg.mxu0
        %839 = vmatpush.msra.mxu0 %v685
        %840 = vmatpush.msra.mxu0 %v684
        %841 = vmatpush.msra.mxu0 %v683
        %842 = vmatpush.msra.mxu0 %v682
        %843 = vmatpush.msra.mxu0 %v681
        %844 = vmatpush.msra.mxu0 %v680
        %845 = vmatpush.msra.mxu0 %v679
        %846 = vmatpush.msra.mxu0 %v678
        %847 = vmatpush.msra.mxu0 %v677
        %848 = vmatpush.msra.mxu0 %v676
        %849 = vmatpush.msra.mxu0 %v675
        %850 = vmatpush.msra.mxu0 %v674
        %851 = vmatpush.msra.mxu0 %v673
        %852 = vmatpush.msra.mxu0 %v672
        %853 = vmatpush.msra.mxu0 %v671
        %854 = vmatpush.msra.mxu0 %v670
        %855 = vmatmul.f32.gmra.mxu0 %v528
        %v856 = vpop.f32.mrf.mxu0
        %v857 = vadd.f32 %v816, %v856
        %858 = vmatmul.f32.gmra.mxu0 %v530
        %v859 = vpop.f32.mrf.mxu0
        %v860 = vadd.f32 %v819, %v859
        %861 = vmatmul.f32.gmra.mxu0 %v532
        %v862 = vpop.f32.mrf.mxu0
        %v863 = vadd.f32 %v822, %v862
        %864 = vmatmul.f32.gmra.mxu0 %v534
        %v865 = vpop.f32.mrf.mxu0
        %v866 = vadd.f32 %v825, %v865
        %867 = vmatmul.f32.gmra.mxu0 %v536
        %v868 = vpop.f32.mrf.mxu0
        %v869 = vadd.f32 %v828, %v868
        %870 = vmatmul.f32.gmra.mxu0 %v538
        %v871 = vpop.f32.mrf.mxu0
        %v872 = vadd.f32 %v831, %v871
        %873 = vmatmul.f32.gmra.mxu0 %v540
        %v874 = vpop.f32.mrf.mxu0
        %v875 = vadd.f32 %v834, %v874
        %876 = vmatmul.f32.gmra.mxu0 %v542
        %v877 = vpop.f32.mrf.mxu0
        %v878 = vadd.f32 %v837, %v877
        %879 = vdwg.mxu0
        %880 = vmatpush.msra.mxu0 %v701
        %881 = vmatpush.msra.mxu0 %v700
        %882 = vmatpush.msra.mxu0 %v699
        %883 = vmatpush.msra.mxu0 %v698
        %884 = vmatpush.msra.mxu0 %v697
        %885 = vmatpush.msra.mxu0 %v696
        %886 = vmatpush.msra.mxu0 %v695
        %887 = vmatpush.msra.mxu0 %v694
        %888 = vmatpush.msra.mxu0 %v693
        %889 = vmatpush.msra.mxu0 %v692
        %890 = vmatpush.msra.mxu0 %v691
        %891 = vmatpush.msra.mxu0 %v690
        %892 = vmatpush.msra.mxu0 %v689
        %893 = vmatpush.msra.mxu0 %v688
        %894 = vmatpush.msra.mxu0 %v687
        %895 = vmatpush.msra.mxu0 %v686
        %896 = vmatmul.f32.gmra.mxu0 %v544
        %v897 = vpop.f32.mrf.mxu0
        %v898 = vadd.f32 %v857, %v897
        %899 = vmatmul.f32.gmra.mxu0 %v546
        %v900 = vpop.f32.mrf.mxu0
        %v901 = vadd.f32 %v860, %v900
        %902 = vmatmul.f32.gmra.mxu0 %v548
        %v903 = vpop.f32.mrf.mxu0
        %v904 = vadd.f32 %v863, %v903
        %905 = vmatmul.f32.gmra.mxu0 %v550
        %v906 = vpop.f32.mrf.mxu0
        %v907 = vadd.f32 %v866, %v906
        %908 = vmatmul.f32.gmra.mxu0 %v552
        %v909 = vpop.f32.mrf.mxu0
        %v910 = vadd.f32 %v869, %v909
        %911 = vmatmul.f32.gmra.mxu0 %v554
        %v912 = vpop.f32.mrf.mxu0
        %v913 = vadd.f32 %v872, %v912
        %914 = vmatmul.f32.gmra.mxu0 %v556
        %v915 = vpop.f32.mrf.mxu0
        %v916 = vadd.f32 %v875, %v915
        %917 = vmatmul.f32.gmra.mxu0 %v558
        %v918 = vpop.f32.mrf.mxu0
        %v919 = vadd.f32 %v878, %v918
        %920 = vdwg.mxu0
        %921 = vmatpush.msra.mxu0 %v717
        %922 = vmatpush.msra.mxu0 %v716
        %923 = vmatpush.msra.mxu0 %v715
        %924 = vmatpush.msra.mxu0 %v714
        %925 = vmatpush.msra.mxu0 %v713
        %926 = vmatpush.msra.mxu0 %v712
        %927 = vmatpush.msra.mxu0 %v711
        %928 = vmatpush.msra.mxu0 %v710
        %929 = vmatpush.msra.mxu0 %v709
        %930 = vmatpush.msra.mxu0 %v708
        %931 = vmatpush.msra.mxu0 %v707
        %932 = vmatpush.msra.mxu0 %v706
        %933 = vmatpush.msra.mxu0 %v705
        %934 = vmatpush.msra.mxu0 %v704
        %935 = vmatpush.msra.mxu0 %v703
        %936 = vmatpush.msra.mxu0 %v702
        %937 = vmatmul.f32.gmra.mxu0 %v559
        %v938 = vpop.f32.mrf.mxu0
        %v939 = vadd.f32 %v898, %v938
        %940 = vmatmul.f32.gmra.mxu0 %v561
        %v941 = vpop.f32.mrf.mxu0
        %v942 = vadd.f32 %v901, %v941
        %943 = vmatmul.f32.gmra.mxu0 %v563
        %v944 = vpop.f32.mrf.mxu0
        %v945 = vadd.f32 %v904, %v944
        %946 = vmatmul.f32.gmra.mxu0 %v565
        %v947 = vpop.f32.mrf.mxu0
        %v948 = vadd.f32 %v907, %v947
        %949 = vmatmul.f32.gmra.mxu0 %v567
        %v950 = vpop.f32.mrf.mxu0
        %v951 = vadd.f32 %v910, %v950
        %952 = vmatmul.f32.gmra.mxu0 %v569
        %v953 = vpop.f32.mrf.mxu0
        %v954 = vadd.f32 %v913, %v953
        %955 = vmatmul.f32.gmra.mxu0 %v571
        %v956 = vpop.f32.mrf.mxu0
        %v957 = vadd.f32 %v916, %v956
        %958 = vmatmul.f32.gmra.mxu0 %v573
        %v959 = vpop.f32.mrf.mxu0
        %v960 = vadd.f32 %v919, %v959
        %961 = vdwg.mxu0
        %962 = vmatpush.msra.mxu0 %v733
        %963 = vmatpush.msra.mxu0 %v732
        %964 = vmatpush.msra.mxu0 %v731
        %965 = vmatpush.msra.mxu0 %v730
        %966 = vmatpush.msra.mxu0 %v729
        %967 = vmatpush.msra.mxu0 %v728
        %968 = vmatpush.msra.mxu0 %v727
        %969 = vmatpush.msra.mxu0 %v726
        %970 = vmatpush.msra.mxu0 %v725
        %971 = vmatpush.msra.mxu0 %v724
        %972 = vmatpush.msra.mxu0 %v723
        %973 = vmatpush.msra.mxu0 %v722
        %974 = vmatpush.msra.mxu0 %v721
        %975 = vmatpush.msra.mxu0 %v720
        %976 = vmatpush.msra.mxu0 %v719
        %977 = vmatpush.msra.mxu0 %v718
        %978 = vmatmul.f32.gmra.mxu0 %v575
        %v979 = vpop.f32.mrf.mxu0
        %v980 = vadd.f32 %v939, %v979
        %981 = vmatmul.f32.gmra.mxu0 %v577
        %v982 = vpop.f32.mrf.mxu0
        %v983 = vadd.f32 %v942, %v982
        %984 = vmatmul.f32.gmra.mxu0 %v579
        %v985 = vpop.f32.mrf.mxu0
        %v986 = vadd.f32 %v945, %v985
        %987 = vmatmul.f32.gmra.mxu0 %v581
        %v988 = vpop.f32.mrf.mxu0
        %v989 = vadd.f32 %v948, %v988
        %990 = vmatmul.f32.gmra.mxu0 %v583
        %v991 = vpop.f32.mrf.mxu0
        %v992 = vadd.f32 %v951, %v991
        %993 = vmatmul.f32.gmra.mxu0 %v585
        %v994 = vpop.f32.mrf.mxu0
        %v995 = vadd.f32 %v954, %v994
        %996 = vmatmul.f32.gmra.mxu0 %v587
        %v997 = vpop.f32.mrf.mxu0
        %v998 = vadd.f32 %v957, %v997
        %999 = vmatmul.f32.gmra.mxu0 %v589
        %v1000 = vpop.f32.mrf.mxu0
        %v1001 = vadd.f32 %v960, %v1000
        %1002 = vdwg.mxu0
        %1003 = vmatpush.msra.mxu0 %v749
        %1004 = vmatpush.msra.mxu0 %v748
        %1005 = vmatpush.msra.mxu0 %v747
        %1006 = vmatpush.msra.mxu0 %v746
        %1007 = vmatpush.msra.mxu0 %v745
        %1008 = vmatpush.msra.mxu0 %v744
        %1009 = vmatpush.msra.mxu0 %v743
        %1010 = vmatpush.msra.mxu0 %v742
        %1011 = vmatpush.msra.mxu0 %v741
        %1012 = vmatpush.msra.mxu0 %v740
        %1013 = vmatpush.msra.mxu0 %v739
        %1014 = vmatpush.msra.mxu0 %v738
        %1015 = vmatpush.msra.mxu0 %v737
        %1016 = vmatpush.msra.mxu0 %v736
        %1017 = vmatpush.msra.mxu0 %v735
        %1018 = vmatpush.msra.mxu0 %v734
        %1019 = vmatmul.f32.gmra.mxu0 %v591
        %v1020 = vpop.f32.mrf.mxu0
        %v1021 = vadd.f32 %v980, %v1020
        %1022 = vmatmul.f32.gmra.mxu0 %v593
        %v1023 = vpop.f32.mrf.mxu0
        %v1024 = vadd.f32 %v983, %v1023
        %1025 = vmatmul.f32.gmra.mxu0 %v595
        %v1026 = vpop.f32.mrf.mxu0
        %v1027 = vadd.f32 %v986, %v1026
        %1028 = vmatmul.f32.gmra.mxu0 %v597
        %v1029 = vpop.f32.mrf.mxu0
        %v1030 = vadd.f32 %v989, %v1029
        %1031 = vmatmul.f32.gmra.mxu0 %v599
        %v1032 = vpop.f32.mrf.mxu0
        %v1033 = vadd.f32 %v992, %v1032
        %1034 = vmatmul.f32.gmra.mxu0 %v601
        %v1035 = vpop.f32.mrf.mxu0
        %v1036 = vadd.f32 %v995, %v1035
        %1037 = vmatmul.f32.gmra.mxu0 %v603
        %v1038 = vpop.f32.mrf.mxu0
        %v1039 = vadd.f32 %v998, %v1038
        %1040 = vmatmul.f32.gmra.mxu0 %v605
        %v1041 = vpop.f32.mrf.mxu0
        %v1042 = vadd.f32 %v1001, %v1041
        %1043 = vdwg.mxu0
        %1044 = vmatpush.msra.mxu0 %v765
        %1045 = vmatpush.msra.mxu0 %v764
        %1046 = vmatpush.msra.mxu0 %v763
        %1047 = vmatpush.msra.mxu0 %v762
        %1048 = vmatpush.msra.mxu0 %v761
        %1049 = vmatpush.msra.mxu0 %v760
        %1050 = vmatpush.msra.mxu0 %v759
        %1051 = vmatpush.msra.mxu0 %v758
        %1052 = vmatpush.msra.mxu0 %v757
        %1053 = vmatpush.msra.mxu0 %v756
        %1054 = vmatpush.msra.mxu0 %v755
        %1055 = vmatpush.msra.mxu0 %v754
        %1056 = vmatpush.msra.mxu0 %v753
        %1057 = vmatpush.msra.mxu0 %v752
        %1058 = vmatpush.msra.mxu0 %v751
        %1059 = vmatpush.msra.mxu0 %v750
        %1060 = vmatmul.f32.gmra.mxu0 %v607
        %v1061 = vpop.f32.mrf.mxu0
        %v1062 = vadd.f32 %v1021, %v1061
        %1063 = vmatmul.f32.gmra.mxu0 %v609
        %v1064 = vpop.f32.mrf.mxu0
        %v1065 = vadd.f32 %v1024, %v1064
        %1066 = vmatmul.f32.gmra.mxu0 %v611
        %v1067 = vpop.f32.mrf.mxu0
        %v1068 = vadd.f32 %v1027, %v1067
        %1069 = vmatmul.f32.gmra.mxu0 %v613
        %v1070 = vpop.f32.mrf.mxu0
        %v1071 = vadd.f32 %v1030, %v1070
        %1072 = vmatmul.f32.gmra.mxu0 %v615
        %v1073 = vpop.f32.mrf.mxu0
        %v1074 = vadd.f32 %v1033, %v1073
        %1075 = vmatmul.f32.gmra.mxu0 %v617
        %v1076 = vpop.f32.mrf.mxu0
        %v1077 = vadd.f32 %v1036, %v1076
        %1078 = vmatmul.f32.gmra.mxu0 %v619
        %v1079 = vpop.f32.mrf.mxu0
        %v1080 = vadd.f32 %v1039, %v1079
        %1081 = vmatmul.f32.gmra.mxu0 %v621
        %v1082 = vpop.f32.mrf.mxu0
        %v1083 = vadd.f32 %v1042, %v1082
        %1084 = vdwg.mxu0
        %1085 = vmatpush.msra.mxu0 %v781
        %1086 = vmatpush.msra.mxu0 %v780
        %1087 = vmatpush.msra.mxu0 %v779
        %1088 = vmatpush.msra.mxu0 %v778
        %1089 = vmatpush.msra.mxu0 %v777
        %1090 = vmatpush.msra.mxu0 %v776
        %1091 = vmatpush.msra.mxu0 %v775
        %1092 = vmatpush.msra.mxu0 %v774
        %1093 = vmatpush.msra.mxu0 %v773
        %1094 = vmatpush.msra.mxu0 %v772
        %1095 = vmatpush.msra.mxu0 %v771
        %1096 = vmatpush.msra.mxu0 %v770
        %1097 = vmatpush.msra.mxu0 %v769
        %1098 = vmatpush.msra.mxu0 %v768
        %1099 = vmatpush.msra.mxu0 %v767
        %1100 = vmatpush.msra.mxu0 %v766
        %1101 = vmatmul.f32.gmra.mxu0 %v623
        %v1102 = vpop.f32.mrf.mxu0
        %v1103 = vadd.f32 %v1062, %v1102
        %1104 = vmatmul.f32.gmra.mxu0 %v625
        %v1105 = vpop.f32.mrf.mxu0
        %v1106 = vadd.f32 %v1065, %v1105
        %1107 = vmatmul.f32.gmra.mxu0 %v627
        %v1108 = vpop.f32.mrf.mxu0
        %v1109 = vadd.f32 %v1068, %v1108
        %1110 = vmatmul.f32.gmra.mxu0 %v629
        %v1111 = vpop.f32.mrf.mxu0
        %v1112 = vadd.f32 %v1071, %v1111
        %1113 = vmatmul.f32.gmra.mxu0 %v631
        %v1114 = vpop.f32.mrf.mxu0
        %v1115 = vadd.f32 %v1074, %v1114
        %1116 = vmatmul.f32.gmra.mxu0 %v633
        %v1117 = vpop.f32.mrf.mxu0
        %v1118 = vadd.f32 %v1077, %v1117
        %1119 = vmatmul.f32.gmra.mxu0 %v635
        %v1120 = vpop.f32.mrf.mxu0
        %v1121 = vadd.f32 %v1080, %v1120
        %1122 = vmatmul.f32.gmra.mxu0 %v637
        %v1123 = vpop.f32.mrf.mxu0
        %v1124 = vadd.f32 %v1083, %v1123
        %1125 = vdwg.mxu0
        %1126 = vmatpush.msra.mxu0 %v797
        %1127 = vmatpush.msra.mxu0 %v796
        %1128 = vmatpush.msra.mxu0 %v795
        %1129 = vmatpush.msra.mxu0 %v794
        %1130 = vmatpush.msra.mxu0 %v793
        %1131 = vmatpush.msra.mxu0 %v792
        %1132 = vmatpush.msra.mxu0 %v791
        %1133 = vmatpush.msra.mxu0 %v790
        %1134 = vmatpush.msra.mxu0 %v789
        %1135 = vmatpush.msra.mxu0 %v788
        %1136 = vmatpush.msra.mxu0 %v787
        %1137 = vmatpush.msra.mxu0 %v786
        %1138 = vmatpush.msra.mxu0 %v785
        %1139 = vmatpush.msra.mxu0 %v784
        %1140 = vmatpush.msra.mxu0 %v783
        %1141 = vmatpush.msra.mxu0 %v782
        %1142 = vmatmul.f32.gmra.mxu0 %v639
        %v1143 = vpop.f32.mrf.mxu0
        %v1144 = vadd.f32 %v1103, %v1143
        %1145 = vmatmul.f32.gmra.mxu0 %v641
        %v1146 = vpop.f32.mrf.mxu0
        %v1147 = vadd.f32 %v1106, %v1146
        %1148 = vmatmul.f32.gmra.mxu0 %v643
        %v1149 = vpop.f32.mrf.mxu0
        %v1150 = vadd.f32 %v1109, %v1149
        %1151 = vmatmul.f32.gmra.mxu0 %v645
        %v1152 = vpop.f32.mrf.mxu0
        %v1153 = vadd.f32 %v1112, %v1152
        %1154 = vmatmul.f32.gmra.mxu0 %v647
        %v1155 = vpop.f32.mrf.mxu0
        %v1156 = vadd.f32 %v1115, %v1155
        %1157 = vmatmul.f32.gmra.mxu0 %v649
        %v1158 = vpop.f32.mrf.mxu0
        %v1159 = vadd.f32 %v1118, %v1158
        %1160 = vmatmul.f32.gmra.mxu0 %v651
        %v1161 = vpop.f32.mrf.mxu0
        %v1162 = vadd.f32 %v1121, %v1161
        %1163 = vmatmul.f32.gmra.mxu0 %v653
        %v1164 = vpop.f32.mrf.mxu0
        %v1165 = vadd.f32 %v1124, %v1164
        %1166 = vdwg.mxu0
        %v1167 = vld [vmem:[%s2] sm:$0x1]
        %v1169 = vperm.slane %v1167, 0
        %v1171 = vmul.f32 %v1144, %v1169
        %v1172 = vmul.f32 %v1147, %v1169
        %v1173 = vmul.f32 %v1150, %v1169
        %v1174 = vmul.f32 %v1153, %v1169
        %v1175 = vmul.f32 %v1156, %v1169
        %v1176 = vmul.f32 %v1159, %v1169
        %v1177 = vmul.f32 %v1162, %v1169
        %v1178 = vmul.f32 %v1165, %v1169
        %v1179 = vld [vmem:[%s3] sm:$0x1]
        %v1181 = vperm.slane %v1179, 0
        %v1183 = vadd.f32 %v1171, %v1181
        %v1184 = vadd.f32 %v1172, %v1181
        %v1185 = vadd.f32 %v1173, %v1181
        %v1186 = vadd.f32 %v1174, %v1181
        %v1187 = vadd.f32 %v1175, %v1181
        %v1188 = vadd.f32 %v1176, %v1181
        %v1189 = vadd.f32 %v1177, %v1181
        %v1190 = vadd.f32 %v1178, %v1181
        %v1191 = vmax.f32 %v1183, 0.0
        %v1192 = vmax.f32 %v1184, 0.0
        %v1193 = vmax.f32 %v1185, 0.0
        %v1194 = vmax.f32 %v1186, 0.0
        %v1195 = vmax.f32 %v1187, 0.0
        %v1196 = vmax.f32 %v1188, 0.0
        %v1197 = vmax.f32 %v1189, 0.0
        %v1198 = vmax.f32 %v1190, 0.0
        %1199 = vst [vmem:[#allocation3] sm:$0xff] 0.0
        %1200 = vst [vmem:[#allocation3 + $0x8] sm:$0x3] 0.0
        %1201 = vst [vmem:[#allocation3 + $0x10] sm:$0xff] 0.0
        %1202 = vst [vmem:[#allocation3 + $0x18] sm:$0x3] 0.0
        %1203 = vst [vmem:[#allocation3 + $0x20] sm:$0xff] 0.0
        %1204 = vst [vmem:[#allocation3 + $0x28] sm:$0x3] 0.0
        %1205 = vst [vmem:[#allocation3 + $0x30] sm:$0xff] 0.0
        %1206 = vst [vmem:[#allocation3 + $0x38] sm:$0x3] 0.0
        %1207 = vst [vmem:[#allocation3 + $0x40] sm:$0xff] 0.0
        %1208 = vst [vmem:[#allocation3 + $0x48] sm:$0x3] 0.0
        %1209 = vst [vmem:[#allocation3 + $0x50] sm:$0xff] 0.0
        %1210 = vst [vmem:[#allocation3 + $0x58] sm:$0x3] 0.0
        %1211 = vst [vmem:[#allocation3 + $0x60] sm:$0xff] 0.0
        %1212 = vst [vmem:[#allocation3 + $0x68] sm:$0x3] 0.0
        %1213 = vst [vmem:[#allocation3 + $0x70] sm:$0xff] 0.0
        %1214 = vst [vmem:[#allocation3 + $0x78] sm:$0x3] 0.0
        %1215 = vst [vmem:[#allocation3 + $0x80] sm:$0xff] 0.0
        %1216 = vst [vmem:[#allocation3 + $0x88] sm:$0x3] 0.0
        %1217 = vst [vmem:[#allocation3 + $0x90] sm:$0xff] 0.0
        %1218 = vst [vmem:[#allocation3 + $0x98] sm:$0x3] 0.0
        %s1219 = scalar_lea.vmem [#allocation3], 16
        %1220 = vst [vmem:[%s1219 + $0x1] sm:$0xff] %v1191
        %1221 = vst [vmem:[%s1219 + $0x11] sm:$0xff] %v1192
        %1222 = vst [vmem:[%s1219 + $0x21] sm:$0xff] %v1193
        %1223 = vst [vmem:[%s1219 + $0x31] sm:$0xff] %v1194
        %1224 = vst [vmem:[%s1219 + $0x41] sm:$0xff] %v1195
        %1225 = vst [vmem:[%s1219 + $0x51] sm:$0xff] %v1196
        %1226 = vst [vmem:[%s1219 + $0x61] sm:$0xff] %v1197
        %1227 = vst [vmem:[%s1219 + $0x71] sm:$0xff] %v1198
        %v1228 = vld [vmem:[#allocation3] sm:$0xff]
        %v1229 = vld [vmem:[#allocation3 + $0x10] sm:$0xff]
        %v1230 = vld [vmem:[#allocation3 + $0x20] sm:$0xff]
        %v1231 = vld [vmem:[#allocation3 + $0x30] sm:$0xff]
        %v1232 = vld [vmem:[#allocation3 + $0x40] sm:$0xff]
        %v1233 = vld [vmem:[#allocation3 + $0x50] sm:$0xff]
        %v1234 = vld [vmem:[#allocation3 + $0x60] sm:$0xff]
        %v1235 = vld [vmem:[#allocation3 + $0x70] sm:$0xff]
        %v1236 = vld [vmem:[#allocation3 + $0x1] sm:$0xff]
        %v1237 = vld [vmem:[#allocation3 + $0x11] sm:$0xff]
        %v1238 = vld [vmem:[#allocation3 + $0x21] sm:$0xff]
        %v1239 = vld [vmem:[#allocation3 + $0x31] sm:$0xff]
        %v1240 = vld [vmem:[#allocation3 + $0x41] sm:$0xff]
        %v1241 = vld [vmem:[#allocation3 + $0x51] sm:$0xff]
        %v1242 = vld [vmem:[#allocation3 + $0x61] sm:$0xff]
        %v1243 = vld [vmem:[#allocation3 + $0x71] sm:$0xff]
        %v1244 = vld [vmem:[#allocation3 + $0x2] sm:$0xff]
        %v1245 = vld [vmem:[#allocation3 + $0x12] sm:$0xff]
        %v1246 = vld [vmem:[#allocation3 + $0x22] sm:$0xff]
        %v1247 = vld [vmem:[#allocation3 + $0x32] sm:$0xff]
        %v1248 = vld [vmem:[#allocation3 + $0x42] sm:$0xff]
        %v1249 = vld [vmem:[#allocation3 + $0x52] sm:$0xff]
        %v1250 = vld [vmem:[#allocation3 + $0x62] sm:$0xff]
        %v1251 = vld [vmem:[#allocation3 + $0x72] sm:$0xff]
        %v1252 = vld [vmem:[%s1219] sm:$0xff]
        %v1253 = vld [vmem:[%s1219 + $0x10] sm:$0xff]
        %v1254 = vld [vmem:[%s1219 + $0x20] sm:$0xff]
        %v1255 = vld [vmem:[%s1219 + $0x30] sm:$0xff]
        %v1256 = vld [vmem:[%s1219 + $0x40] sm:$0xff]
        %v1257 = vld [vmem:[%s1219 + $0x50] sm:$0xff]
        %v1258 = vld [vmem:[%s1219 + $0x60] sm:$0xff]
        %v1259 = vld [vmem:[%s1219 + $0x70] sm:$0xff]
        %v1260 = vld [vmem:[%s1219 + $0x1] sm:$0xff]
        %v1261 = vld [vmem:[%s1219 + $0x11] sm:$0xff]
        %v1262 = vld [vmem:[%s1219 + $0x21] sm:$0xff]
        %v1263 = vld [vmem:[%s1219 + $0x31] sm:$0xff]
        %v1264 = vld [vmem:[%s1219 + $0x41] sm:$0xff]
        %v1265 = vld [vmem:[%s1219 + $0x51] sm:$0xff]
        %v1266 = vld [vmem:[%s1219 + $0x61] sm:$0xff]
        %v1267 = vld [vmem:[%s1219 + $0x71] sm:$0xff]
        %v1268 = vld [vmem:[%s1219 + $0x2] sm:$0xff]
        %v1269 = vld [vmem:[%s1219 + $0x12] sm:$0xff]
        %v1270 = vld [vmem:[%s1219 + $0x22] sm:$0xff]
        %v1271 = vld [vmem:[%s1219 + $0x32] sm:$0xff]
        %v1272 = vld [vmem:[%s1219 + $0x42] sm:$0xff]
        %v1273 = vld [vmem:[%s1219 + $0x52] sm:$0xff]
        %v1274 = vld [vmem:[%s1219 + $0x62] sm:$0xff]
        %v1275 = vld [vmem:[%s1219 + $0x72] sm:$0xff]
        %s1276 = scalar_lea.vmem [#allocation3], 32
        %v1277 = vld [vmem:[%s1276] sm:$0xff]
        %v1278 = vld [vmem:[%s1276 + $0x10] sm:$0xff]
        %v1279 = vld [vmem:[%s1276 + $0x20] sm:$0xff]
        %v1280 = vld [vmem:[%s1276 + $0x30] sm:$0xff]
        %v1281 = vld [vmem:[%s1276 + $0x40] sm:$0xff]
        %v1282 = vld [vmem:[%s1276 + $0x50] sm:$0xff]
        %v1283 = vld [vmem:[%s1276 + $0x60] sm:$0xff]
        %v1284 = vld [vmem:[%s1276 + $0x70] sm:$0xff]
        %v1285 = vld [vmem:[%s1276 + $0x1] sm:$0xff]
        %v1286 = vld [vmem:[%s1276 + $0x11] sm:$0xff]
        %v1287 = vld [vmem:[%s1276 + $0x21] sm:$0xff]
        %v1288 = vld [vmem:[%s1276 + $0x31] sm:$0xff]
        %v1289 = vld [vmem:[%s1276 + $0x41] sm:$0xff]
        %v1290 = vld [vmem:[%s1276 + $0x51] sm:$0xff]
        %v1291 = vld [vmem:[%s1276 + $0x61] sm:$0xff]
        %v1292 = vld [vmem:[%s1276 + $0x71] sm:$0xff]
        %v1293 = vld [vmem:[%s1276 + $0x2] sm:$0xff]
        %v1294 = vld [vmem:[%s1276 + $0x12] sm:$0xff]
        %v1295 = vld [vmem:[%s1276 + $0x22] sm:$0xff]
        %v1296 = vld [vmem:[%s1276 + $0x32] sm:$0xff]
        %v1297 = vld [vmem:[%s1276 + $0x42] sm:$0xff]
        %v1298 = vld [vmem:[%s1276 + $0x52] sm:$0xff]
        %v1299 = vld [vmem:[%s1276 + $0x62] sm:$0xff]
        %v1300 = vld [vmem:[%s1276 + $0x72] sm:$0xff]
        %v1301 = vld [vmem:[#allocation7] sm:$0xff]
        %v1302 = vld [vmem:[#allocation7 + $0x8] sm:$0xff]
        %v1303 = vld [vmem:[#allocation7 + $0x10] sm:$0xff]
        %v1304 = vld [vmem:[#allocation7 + $0x18] sm:$0xff]
        %v1305 = vld [vmem:[#allocation7 + $0x20] sm:$0xff]
        %v1306 = vld [vmem:[#allocation7 + $0x28] sm:$0xff]
        %v1307 = vld [vmem:[#allocation7 + $0x30] sm:$0xff]
        %v1308 = vld [vmem:[#allocation7 + $0x38] sm:$0xff]
        %v1309 = vld [vmem:[#allocation7 + $0x40] sm:$0xff]
        %v1310 = vld [vmem:[#allocation7 + $0x48] sm:$0xff]
        %v1311 = vld [vmem:[#allocation7 + $0x50] sm:$0xff]
        %v1312 = vld [vmem:[#allocation7 + $0x58] sm:$0xff]
        %v1313 = vld [vmem:[#allocation7 + $0x60] sm:$0xff]
        %v1314 = vld [vmem:[#allocation7 + $0x68] sm:$0xff]
        %v1315 = vld [vmem:[#allocation7 + $0x70] sm:$0xff]
        %v1316 = vld [vmem:[#allocation7 + $0x78] sm:$0xff]
        %v1317 = vld [vmem:[#allocation7 + $0x80] sm:$0xff]
        %v1318 = vld [vmem:[#allocation7 + $0x88] sm:$0xff]
        %v1319 = vld [vmem:[#allocation7 + $0x90] sm:$0xff]
        %v1320 = vld [vmem:[#allocation7 + $0x98] sm:$0xff]
        %v1321 = vld [vmem:[#allocation7 + $0xa0] sm:$0xff]
        %v1322 = vld [vmem:[#allocation7 + $0xa8] sm:$0xff]
        %v1323 = vld [vmem:[#allocation7 + $0xb0] sm:$0xff]
        %v1324 = vld [vmem:[#allocation7 + $0xb8] sm:$0xff]
        %v1325 = vld [vmem:[#allocation7 + $0xc0] sm:$0xff]
        %v1326 = vld [vmem:[#allocation7 + $0xc8] sm:$0xff]
        %v1327 = vld [vmem:[#allocation7 + $0xd0] sm:$0xff]
        %v1328 = vld [vmem:[#allocation7 + $0xd8] sm:$0xff]
        %v1329 = vld [vmem:[#allocation7 + $0xe0] sm:$0xff]
        %v1330 = vld [vmem:[#allocation7 + $0xe8] sm:$0xff]
        %v1331 = vld [vmem:[#allocation7 + $0xf0] sm:$0xff]
        %v1332 = vld [vmem:[#allocation7 + $0xf8] sm:$0xff]
        %v1333 = vld [vmem:[#allocation7 + $0x100] sm:$0xff]
        %v1334 = vld [vmem:[#allocation7 + $0x108] sm:$0xff]
        %v1335 = vld [vmem:[#allocation7 + $0x110] sm:$0xff]
        %v1336 = vld [vmem:[#allocation7 + $0x118] sm:$0xff]
        %v1337 = vld [vmem:[#allocation7 + $0x120] sm:$0xff]
        %v1338 = vld [vmem:[#allocation7 + $0x128] sm:$0xff]
        %v1339 = vld [vmem:[#allocation7 + $0x130] sm:$0xff]
        %v1340 = vld [vmem:[#allocation7 + $0x138] sm:$0xff]
        %v1341 = vld [vmem:[#allocation7 + $0x140] sm:$0xff]
        %v1342 = vld [vmem:[#allocation7 + $0x148] sm:$0xff]
        %v1343 = vld [vmem:[#allocation7 + $0x150] sm:$0xff]
        %v1344 = vld [vmem:[#allocation7 + $0x158] sm:$0xff]
        %v1345 = vld [vmem:[#allocation7 + $0x160] sm:$0xff]
        %v1346 = vld [vmem:[#allocation7 + $0x168] sm:$0xff]
        %v1347 = vld [vmem:[#allocation7 + $0x170] sm:$0xff]
        %v1348 = vld [vmem:[#allocation7 + $0x178] sm:$0xff]
        %v1349 = vld [vmem:[#allocation7 + $0x180] sm:$0xff]
        %v1350 = vld [vmem:[#allocation7 + $0x188] sm:$0xff]
        %v1351 = vld [vmem:[#allocation7 + $0x190] sm:$0xff]
        %v1352 = vld [vmem:[#allocation7 + $0x198] sm:$0xff]
        %v1353 = vld [vmem:[#allocation7 + $0x1a0] sm:$0xff]
        %v1354 = vld [vmem:[#allocation7 + $0x1a8] sm:$0xff]
        %v1355 = vld [vmem:[#allocation7 + $0x1b0] sm:$0xff]
        %v1356 = vld [vmem:[#allocation7 + $0x1b8] sm:$0xff]
        %v1357 = vld [vmem:[#allocation7 + $0x1c0] sm:$0xff]
        %v1358 = vld [vmem:[#allocation7 + $0x1c8] sm:$0xff]
        %v1359 = vld [vmem:[#allocation7 + $0x1d0] sm:$0xff]
        %v1360 = vld [vmem:[#allocation7 + $0x1d8] sm:$0xff]
        %v1361 = vld [vmem:[#allocation7 + $0x1e0] sm:$0xff]
        %v1362 = vld [vmem:[#allocation7 + $0x1e8] sm:$0xff]
        %v1363 = vld [vmem:[#allocation7 + $0x1f0] sm:$0xff]
        %v1364 = vld [vmem:[#allocation7 + $0x1f8] sm:$0xff]
        %v1365 = vld [vmem:[#allocation7 + $0x200] sm:$0xff]
        %v1366 = vld [vmem:[#allocation7 + $0x208] sm:$0xff]
        %v1367 = vld [vmem:[#allocation7 + $0x210] sm:$0xff]
        %v1368 = vld [vmem:[#allocation7 + $0x218] sm:$0xff]
        %v1369 = vld [vmem:[#allocation7 + $0x220] sm:$0xff]
        %v1370 = vld [vmem:[#allocation7 + $0x228] sm:$0xff]
        %v1371 = vld [vmem:[#allocation7 + $0x230] sm:$0xff]
        %v1372 = vld [vmem:[#allocation7 + $0x238] sm:$0xff]
        %v1373 = vld [vmem:[#allocation7 + $0x240] sm:$0xff]
        %v1374 = vld [vmem:[#allocation7 + $0x248] sm:$0xff]
        %v1375 = vld [vmem:[#allocation7 + $0x250] sm:$0xff]
        %v1376 = vld [vmem:[#allocation7 + $0x258] sm:$0xff]
        %v1377 = vld [vmem:[#allocation7 + $0x260] sm:$0xff]
        %v1378 = vld [vmem:[#allocation7 + $0x268] sm:$0xff]
        %v1379 = vld [vmem:[#allocation7 + $0x270] sm:$0xff]
        %v1380 = vld [vmem:[#allocation7 + $0x278] sm:$0xff]
        %v1381 = vld [vmem:[#allocation7 + $0x280] sm:$0xff]
        %v1382 = vld [vmem:[#allocation7 + $0x288] sm:$0xff]
        %v1383 = vld [vmem:[#allocation7 + $0x290] sm:$0xff]
        %v1384 = vld [vmem:[#allocation7 + $0x298] sm:$0xff]
        %v1385 = vld [vmem:[#allocation7 + $0x2a0] sm:$0xff]
        %v1386 = vld [vmem:[#allocation7 + $0x2a8] sm:$0xff]
        %v1387 = vld [vmem:[#allocation7 + $0x2b0] sm:$0xff]
        %v1388 = vld [vmem:[#allocation7 + $0x2b8] sm:$0xff]
        %v1389 = vld [vmem:[#allocation7 + $0x2c0] sm:$0xff]
        %v1390 = vld [vmem:[#allocation7 + $0x2c8] sm:$0xff]
        %v1391 = vld [vmem:[#allocation7 + $0x2d0] sm:$0xff]
        %v1392 = vld [vmem:[#allocation7 + $0x2d8] sm:$0xff]
        %v1393 = vld [vmem:[#allocation7 + $0x2e0] sm:$0xff]
        %v1394 = vld [vmem:[#allocation7 + $0x2e8] sm:$0xff]
        %v1395 = vld [vmem:[#allocation7 + $0x2f0] sm:$0xff]
        %v1396 = vld [vmem:[#allocation7 + $0x2f8] sm:$0xff]
        %v1397 = vld [vmem:[#allocation7 + $0x300] sm:$0xff]
        %v1398 = vld [vmem:[#allocation7 + $0x308] sm:$0xff]
        %v1399 = vld [vmem:[#allocation7 + $0x310] sm:$0xff]
        %v1400 = vld [vmem:[#allocation7 + $0x318] sm:$0xff]
        %v1401 = vld [vmem:[#allocation7 + $0x320] sm:$0xff]
        %v1402 = vld [vmem:[#allocation7 + $0x328] sm:$0xff]
        %v1403 = vld [vmem:[#allocation7 + $0x330] sm:$0xff]
        %v1404 = vld [vmem:[#allocation7 + $0x338] sm:$0xff]
        %v1405 = vld [vmem:[#allocation7 + $0x340] sm:$0xff]
        %v1406 = vld [vmem:[#allocation7 + $0x348] sm:$0xff]
        %v1407 = vld [vmem:[#allocation7 + $0x350] sm:$0xff]
        %v1408 = vld [vmem:[#allocation7 + $0x358] sm:$0xff]
        %v1409 = vld [vmem:[#allocation7 + $0x360] sm:$0xff]
        %v1410 = vld [vmem:[#allocation7 + $0x368] sm:$0xff]
        %v1411 = vld [vmem:[#allocation7 + $0x370] sm:$0xff]
        %v1412 = vld [vmem:[#allocation7 + $0x378] sm:$0xff]
        %v1413 = vld [vmem:[#allocation7 + $0x380] sm:$0xff]
        %v1414 = vld [vmem:[#allocation7 + $0x388] sm:$0xff]
        %v1415 = vld [vmem:[#allocation7 + $0x390] sm:$0xff]
        %v1416 = vld [vmem:[#allocation7 + $0x398] sm:$0xff]
        %v1417 = vld [vmem:[#allocation7 + $0x3a0] sm:$0xff]
        %v1418 = vld [vmem:[#allocation7 + $0x3a8] sm:$0xff]
        %v1419 = vld [vmem:[#allocation7 + $0x3b0] sm:$0xff]
        %v1420 = vld [vmem:[#allocation7 + $0x3b8] sm:$0xff]
        %v1421 = vld [vmem:[#allocation7 + $0x3c0] sm:$0xff]
        %v1422 = vld [vmem:[#allocation7 + $0x3c8] sm:$0xff]
        %v1423 = vld [vmem:[#allocation7 + $0x3d0] sm:$0xff]
        %v1424 = vld [vmem:[#allocation7 + $0x3d8] sm:$0xff]
        %v1425 = vld [vmem:[#allocation7 + $0x3e0] sm:$0xff]
        %v1426 = vld [vmem:[#allocation7 + $0x3e8] sm:$0xff]
        %v1427 = vld [vmem:[#allocation7 + $0x3f0] sm:$0xff]
        %v1428 = vld [vmem:[#allocation7 + $0x3f8] sm:$0xff]
        %v1429 = vld [vmem:[#allocation7 + $0x400] sm:$0xff]
        %v1430 = vld [vmem:[#allocation7 + $0x408] sm:$0xff]
        %v1431 = vld [vmem:[#allocation7 + $0x410] sm:$0xff]
        %v1432 = vld [vmem:[#allocation7 + $0x418] sm:$0xff]
        %v1433 = vld [vmem:[#allocation7 + $0x420] sm:$0xff]
        %v1434 = vld [vmem:[#allocation7 + $0x428] sm:$0xff]
        %v1435 = vld [vmem:[#allocation7 + $0x430] sm:$0xff]
        %v1436 = vld [vmem:[#allocation7 + $0x438] sm:$0xff]
        %v1437 = vld [vmem:[#allocation7 + $0x440] sm:$0xff]
        %v1438 = vld [vmem:[#allocation7 + $0x448] sm:$0xff]
        %v1439 = vld [vmem:[#allocation7 + $0x450] sm:$0xff]
        %v1440 = vld [vmem:[#allocation7 + $0x458] sm:$0xff]
        %v1441 = vld [vmem:[#allocation7 + $0x460] sm:$0xff]
        %v1442 = vld [vmem:[#allocation7 + $0x468] sm:$0xff]
        %v1443 = vld [vmem:[#allocation7 + $0x470] sm:$0xff]
        %v1444 = vld [vmem:[#allocation7 + $0x478] sm:$0xff]
        %1445 = vmatpush.msra.mxu0 %v1316
        %1446 = vmatpush.msra.mxu0 %v1315
        %1447 = vmatpush.msra.mxu0 %v1314
        %1448 = vmatpush.msra.mxu0 %v1313
        %1449 = vmatpush.msra.mxu0 %v1312
        %1450 = vmatpush.msra.mxu0 %v1311
        %1451 = vmatpush.msra.mxu0 %v1310
        %1452 = vmatpush.msra.mxu0 %v1309
        %1453 = vmatpush.msra.mxu0 %v1308
        %1454 = vmatpush.msra.mxu0 %v1307
        %1455 = vmatpush.msra.mxu0 %v1306
        %1456 = vmatpush.msra.mxu0 %v1305
        %1457 = vmatpush.msra.mxu0 %v1304
        %1458 = vmatpush.msra.mxu0 %v1303
        %1459 = vmatpush.msra.mxu0 %v1302
        %1460 = vmatpush.msra.mxu0 %v1301
        %1461 = vmatmul.f32.gmra.mxu0 %v1228
        %v1462 = vpop.f32.mrf.mxu0
        %v1463 = vadd.f32 0.0, %v1462
        %1464 = vmatmul.f32.gmra.mxu0 %v1229
        %v1465 = vpop.f32.mrf.mxu0
        %v1466 = vadd.f32 0.0, %v1465
        %1467 = vmatmul.f32.gmra.mxu0 %v1230
        %v1468 = vpop.f32.mrf.mxu0
        %v1469 = vadd.f32 0.0, %v1468
        %1470 = vmatmul.f32.gmra.mxu0 %v1231
        %v1471 = vpop.f32.mrf.mxu0
        %v1472 = vadd.f32 0.0, %v1471
        %1473 = vmatmul.f32.gmra.mxu0 %v1232
        %v1474 = vpop.f32.mrf.mxu0
        %v1475 = vadd.f32 0.0, %v1474
        %1476 = vmatmul.f32.gmra.mxu0 %v1233
        %v1477 = vpop.f32.mrf.mxu0
        %v1478 = vadd.f32 0.0, %v1477
        %1479 = vmatmul.f32.gmra.mxu0 %v1234
        %v1480 = vpop.f32.mrf.mxu0
        %v1481 = vadd.f32 0.0, %v1480
        %1482 = vmatmul.f32.gmra.mxu0 %v1235
        %v1483 = vpop.f32.mrf.mxu0
        %v1484 = vadd.f32 0.0, %v1483
        %1485 = vdwg.mxu0
        %1486 = vmatpush.msra.mxu0 %v1332
        %1487 = vmatpush.msra.mxu0 %v1331
        %1488 = vmatpush.msra.mxu0 %v1330
        %1489 = vmatpush.msra.mxu0 %v1329
        %1490 = vmatpush.msra.mxu0 %v1328
        %1491 = vmatpush.msra.mxu0 %v1327
        %1492 = vmatpush.msra.mxu0 %v1326
        %1493 = vmatpush.msra.mxu0 %v1325
        %1494 = vmatpush.msra.mxu0 %v1324
        %1495 = vmatpush.msra.mxu0 %v1323
        %1496 = vmatpush.msra.mxu0 %v1322
        %1497 = vmatpush.msra.mxu0 %v1321
        %1498 = vmatpush.msra.mxu0 %v1320
        %1499 = vmatpush.msra.mxu0 %v1319
        %1500 = vmatpush.msra.mxu0 %v1318
        %1501 = vmatpush.msra.mxu0 %v1317
        %1502 = vmatmul.f32.gmra.mxu0 %v1236
        %v1503 = vpop.f32.mrf.mxu0
        %v1504 = vadd.f32 %v1463, %v1503
        %1505 = vmatmul.f32.gmra.mxu0 %v1237
        %v1506 = vpop.f32.mrf.mxu0
        %v1507 = vadd.f32 %v1466, %v1506
        %1508 = vmatmul.f32.gmra.mxu0 %v1238
        %v1509 = vpop.f32.mrf.mxu0
        %v1510 = vadd.f32 %v1469, %v1509
        %1511 = vmatmul.f32.gmra.mxu0 %v1239
        %v1512 = vpop.f32.mrf.mxu0
        %v1513 = vadd.f32 %v1472, %v1512
        %1514 = vmatmul.f32.gmra.mxu0 %v1240
        %v1515 = vpop.f32.mrf.mxu0
        %v1516 = vadd.f32 %v1475, %v1515
        %1517 = vmatmul.f32.gmra.mxu0 %v1241
        %v1518 = vpop.f32.mrf.mxu0
        %v1519 = vadd.f32 %v1478, %v1518
        %1520 = vmatmul.f32.gmra.mxu0 %v1242
        %v1521 = vpop.f32.mrf.mxu0
        %v1522 = vadd.f32 %v1481, %v1521
        %1523 = vmatmul.f32.gmra.mxu0 %v1243
        %v1524 = vpop.f32.mrf.mxu0
        %v1525 = vadd.f32 %v1484, %v1524
        %1526 = vdwg.mxu0
        %1527 = vmatpush.msra.mxu0 %v1348
        %1528 = vmatpush.msra.mxu0 %v1347
        %1529 = vmatpush.msra.mxu0 %v1346
        %1530 = vmatpush.msra.mxu0 %v1345
        %1531 = vmatpush.msra.mxu0 %v1344
        %1532 = vmatpush.msra.mxu0 %v1343
        %1533 = vmatpush.msra.mxu0 %v1342
        %1534 = vmatpush.msra.mxu0 %v1341
        %1535 = vmatpush.msra.mxu0 %v1340
        %1536 = vmatpush.msra.mxu0 %v1339
        %1537 = vmatpush.msra.mxu0 %v1338
        %1538 = vmatpush.msra.mxu0 %v1337
        %1539 = vmatpush.msra.mxu0 %v1336
        %1540 = vmatpush.msra.mxu0 %v1335
        %1541 = vmatpush.msra.mxu0 %v1334
        %1542 = vmatpush.msra.mxu0 %v1333
        %1543 = vmatmul.f32.gmra.mxu0 %v1244
        %v1544 = vpop.f32.mrf.mxu0
        %v1545 = vadd.f32 %v1504, %v1544
        %1546 = vmatmul.f32.gmra.mxu0 %v1245
        %v1547 = vpop.f32.mrf.mxu0
        %v1548 = vadd.f32 %v1507, %v1547
        %1549 = vmatmul.f32.gmra.mxu0 %v1246
        %v1550 = vpop.f32.mrf.mxu0
        %v1551 = vadd.f32 %v1510, %v1550
        %1552 = vmatmul.f32.gmra.mxu0 %v1247
        %v1553 = vpop.f32.mrf.mxu0
        %v1554 = vadd.f32 %v1513, %v1553
        %1555 = vmatmul.f32.gmra.mxu0 %v1248
        %v1556 = vpop.f32.mrf.mxu0
        %v1557 = vadd.f32 %v1516, %v1556
        %1558 = vmatmul.f32.gmra.mxu0 %v1249
        %v1559 = vpop.f32.mrf.mxu0
        %v1560 = vadd.f32 %v1519, %v1559
        %1561 = vmatmul.f32.gmra.mxu0 %v1250
        %v1562 = vpop.f32.mrf.mxu0
        %v1563 = vadd.f32 %v1522, %v1562
        %1564 = vmatmul.f32.gmra.mxu0 %v1251
        %v1565 = vpop.f32.mrf.mxu0
        %v1566 = vadd.f32 %v1525, %v1565
        %1567 = vdwg.mxu0
        %1568 = vmatpush.msra.mxu0 %v1364
        %1569 = vmatpush.msra.mxu0 %v1363
        %1570 = vmatpush.msra.mxu0 %v1362
        %1571 = vmatpush.msra.mxu0 %v1361
        %1572 = vmatpush.msra.mxu0 %v1360
        %1573 = vmatpush.msra.mxu0 %v1359
        %1574 = vmatpush.msra.mxu0 %v1358
        %1575 = vmatpush.msra.mxu0 %v1357
        %1576 = vmatpush.msra.mxu0 %v1356
        %1577 = vmatpush.msra.mxu0 %v1355
        %1578 = vmatpush.msra.mxu0 %v1354
        %1579 = vmatpush.msra.mxu0 %v1353
        %1580 = vmatpush.msra.mxu0 %v1352
        %1581 = vmatpush.msra.mxu0 %v1351
        %1582 = vmatpush.msra.mxu0 %v1350
        %1583 = vmatpush.msra.mxu0 %v1349
        %1584 = vmatmul.f32.gmra.mxu0 %v1252
        %v1585 = vpop.f32.mrf.mxu0
        %v1586 = vadd.f32 %v1545, %v1585
        %1587 = vmatmul.f32.gmra.mxu0 %v1253
        %v1588 = vpop.f32.mrf.mxu0
        %v1589 = vadd.f32 %v1548, %v1588
        %1590 = vmatmul.f32.gmra.mxu0 %v1254
        %v1591 = vpop.f32.mrf.mxu0
        %v1592 = vadd.f32 %v1551, %v1591
        %1593 = vmatmul.f32.gmra.mxu0 %v1255
        %v1594 = vpop.f32.mrf.mxu0
        %v1595 = vadd.f32 %v1554, %v1594
        %1596 = vmatmul.f32.gmra.mxu0 %v1256
        %v1597 = vpop.f32.mrf.mxu0
        %v1598 = vadd.f32 %v1557, %v1597
        %1599 = vmatmul.f32.gmra.mxu0 %v1257
        %v1600 = vpop.f32.mrf.mxu0
        %v1601 = vadd.f32 %v1560, %v1600
        %1602 = vmatmul.f32.gmra.mxu0 %v1258
        %v1603 = vpop.f32.mrf.mxu0
        %v1604 = vadd.f32 %v1563, %v1603
        %1605 = vmatmul.f32.gmra.mxu0 %v1259
        %v1606 = vpop.f32.mrf.mxu0
        %v1607 = vadd.f32 %v1566, %v1606
        %1608 = vdwg.mxu0
        %1609 = vmatpush.msra.mxu0 %v1380
        %1610 = vmatpush.msra.mxu0 %v1379
        %1611 = vmatpush.msra.mxu0 %v1378
        %1612 = vmatpush.msra.mxu0 %v1377
        %1613 = vmatpush.msra.mxu0 %v1376
        %1614 = vmatpush.msra.mxu0 %v1375
        %1615 = vmatpush.msra.mxu0 %v1374
        %1616 = vmatpush.msra.mxu0 %v1373
        %1617 = vmatpush.msra.mxu0 %v1372
        %1618 = vmatpush.msra.mxu0 %v1371
        %1619 = vmatpush.msra.mxu0 %v1370
        %1620 = vmatpush.msra.mxu0 %v1369
        %1621 = vmatpush.msra.mxu0 %v1368
        %1622 = vmatpush.msra.mxu0 %v1367
        %1623 = vmatpush.msra.mxu0 %v1366
        %1624 = vmatpush.msra.mxu0 %v1365
        %1625 = vmatmul.f32.gmra.mxu0 %v1260
        %v1626 = vpop.f32.mrf.mxu0
        %v1627 = vadd.f32 %v1586, %v1626
        %1628 = vmatmul.f32.gmra.mxu0 %v1261
        %v1629 = vpop.f32.mrf.mxu0
        %v1630 = vadd.f32 %v1589, %v1629
        %1631 = vmatmul.f32.gmra.mxu0 %v1262
        %v1632 = vpop.f32.mrf.mxu0
        %v1633 = vadd.f32 %v1592, %v1632
        %1634 = vmatmul.f32.gmra.mxu0 %v1263
        %v1635 = vpop.f32.mrf.mxu0
        %v1636 = vadd.f32 %v1595, %v1635
        %1637 = vmatmul.f32.gmra.mxu0 %v1264
        %v1638 = vpop.f32.mrf.mxu0
        %v1639 = vadd.f32 %v1598, %v1638
        %1640 = vmatmul.f32.gmra.mxu0 %v1265
        %v1641 = vpop.f32.mrf.mxu0
        %v1642 = vadd.f32 %v1601, %v1641
        %1643 = vmatmul.f32.gmra.mxu0 %v1266
        %v1644 = vpop.f32.mrf.mxu0
        %v1645 = vadd.f32 %v1604, %v1644
        %1646 = vmatmul.f32.gmra.mxu0 %v1267
        %v1647 = vpop.f32.mrf.mxu0
        %v1648 = vadd.f32 %v1607, %v1647
        %1649 = vdwg.mxu0
        %1650 = vmatpush.msra.mxu0 %v1396
        %1651 = vmatpush.msra.mxu0 %v1395
        %1652 = vmatpush.msra.mxu0 %v1394
        %1653 = vmatpush.msra.mxu0 %v1393
        %1654 = vmatpush.msra.mxu0 %v1392
        %1655 = vmatpush.msra.mxu0 %v1391
        %1656 = vmatpush.msra.mxu0 %v1390
        %1657 = vmatpush.msra.mxu0 %v1389
        %1658 = vmatpush.msra.mxu0 %v1388
        %1659 = vmatpush.msra.mxu0 %v1387
        %1660 = vmatpush.msra.mxu0 %v1386
        %1661 = vmatpush.msra.mxu0 %v1385
        %1662 = vmatpush.msra.mxu0 %v1384
        %1663 = vmatpush.msra.mxu0 %v1383
        %1664 = vmatpush.msra.mxu0 %v1382
        %1665 = vmatpush.msra.mxu0 %v1381
        %1666 = vmatmul.f32.gmra.mxu0 %v1268
        %v1667 = vpop.f32.mrf.mxu0
        %v1668 = vadd.f32 %v1627, %v1667
        %1669 = vmatmul.f32.gmra.mxu0 %v1269
        %v1670 = vpop.f32.mrf.mxu0
        %v1671 = vadd.f32 %v1630, %v1670
        %1672 = vmatmul.f32.gmra.mxu0 %v1270
        %v1673 = vpop.f32.mrf.mxu0
        %v1674 = vadd.f32 %v1633, %v1673
        %1675 = vmatmul.f32.gmra.mxu0 %v1271
        %v1676 = vpop.f32.mrf.mxu0
        %v1677 = vadd.f32 %v1636, %v1676
        %1678 = vmatmul.f32.gmra.mxu0 %v1272
        %v1679 = vpop.f32.mrf.mxu0
        %v1680 = vadd.f32 %v1639, %v1679
        %1681 = vmatmul.f32.gmra.mxu0 %v1273
        %v1682 = vpop.f32.mrf.mxu0
        %v1683 = vadd.f32 %v1642, %v1682
        %1684 = vmatmul.f32.gmra.mxu0 %v1274
        %v1685 = vpop.f32.mrf.mxu0
        %v1686 = vadd.f32 %v1645, %v1685
        %1687 = vmatmul.f32.gmra.mxu0 %v1275
        %v1688 = vpop.f32.mrf.mxu0
        %v1689 = vadd.f32 %v1648, %v1688
        %1690 = vdwg.mxu0
        %1691 = vmatpush.msra.mxu0 %v1412
        %1692 = vmatpush.msra.mxu0 %v1411
        %1693 = vmatpush.msra.mxu0 %v1410
        %1694 = vmatpush.msra.mxu0 %v1409
        %1695 = vmatpush.msra.mxu0 %v1408
        %1696 = vmatpush.msra.mxu0 %v1407
        %1697 = vmatpush.msra.mxu0 %v1406
        %1698 = vmatpush.msra.mxu0 %v1405
        %1699 = vmatpush.msra.mxu0 %v1404
        %1700 = vmatpush.msra.mxu0 %v1403
        %1701 = vmatpush.msra.mxu0 %v1402
        %1702 = vmatpush.msra.mxu0 %v1401
        %1703 = vmatpush.msra.mxu0 %v1400
        %1704 = vmatpush.msra.mxu0 %v1399
        %1705 = vmatpush.msra.mxu0 %v1398
        %1706 = vmatpush.msra.mxu0 %v1397
        %1707 = vmatmul.f32.gmra.mxu0 %v1277
        %v1708 = vpop.f32.mrf.mxu0
        %v1709 = vadd.f32 %v1668, %v1708
        %1710 = vmatmul.f32.gmra.mxu0 %v1278
        %v1711 = vpop.f32.mrf.mxu0
        %v1712 = vadd.f32 %v1671, %v1711
        %1713 = vmatmul.f32.gmra.mxu0 %v1279
        %v1714 = vpop.f32.mrf.mxu0
        %v1715 = vadd.f32 %v1674, %v1714
        %1716 = vmatmul.f32.gmra.mxu0 %v1280
        %v1717 = vpop.f32.mrf.mxu0
        %v1718 = vadd.f32 %v1677, %v1717
        %1719 = vmatmul.f32.gmra.mxu0 %v1281
        %v1720 = vpop.f32.mrf.mxu0
        %v1721 = vadd.f32 %v1680, %v1720
        %1722 = vmatmul.f32.gmra.mxu0 %v1282
        %v1723 = vpop.f32.mrf.mxu0
        %v1724 = vadd.f32 %v1683, %v1723
        %1725 = vmatmul.f32.gmra.mxu0 %v1283
        %v1726 = vpop.f32.mrf.mxu0
        %v1727 = vadd.f32 %v1686, %v1726
        %1728 = vmatmul.f32.gmra.mxu0 %v1284
        %v1729 = vpop.f32.mrf.mxu0
        %v1730 = vadd.f32 %v1689, %v1729
        %1731 = vdwg.mxu0
        %1732 = vmatpush.msra.mxu0 %v1428
        %1733 = vmatpush.msra.mxu0 %v1427
        %1734 = vmatpush.msra.mxu0 %v1426
        %1735 = vmatpush.msra.mxu0 %v1425
        %1736 = vmatpush.msra.mxu0 %v1424
        %1737 = vmatpush.msra.mxu0 %v1423
        %1738 = vmatpush.msra.mxu0 %v1422
        %1739 = vmatpush.msra.mxu0 %v1421
        %1740 = vmatpush.msra.mxu0 %v1420
        %1741 = vmatpush.msra.mxu0 %v1419
        %1742 = vmatpush.msra.mxu0 %v1418
        %1743 = vmatpush.msra.mxu0 %v1417
        %1744 = vmatpush.msra.mxu0 %v1416
        %1745 = vmatpush.msra.mxu0 %v1415
        %1746 = vmatpush.msra.mxu0 %v1414
        %1747 = vmatpush.msra.mxu0 %v1413
        %1748 = vmatmul.f32.gmra.mxu0 %v1285
        %v1749 = vpop.f32.mrf.mxu0
        %v1750 = vadd.f32 %v1709, %v1749
        %1751 = vmatmul.f32.gmra.mxu0 %v1286
        %v1752 = vpop.f32.mrf.mxu0
        %v1753 = vadd.f32 %v1712, %v1752
        %1754 = vmatmul.f32.gmra.mxu0 %v1287
        %v1755 = vpop.f32.mrf.mxu0
        %v1756 = vadd.f32 %v1715, %v1755
        %1757 = vmatmul.f32.gmra.mxu0 %v1288
        %v1758 = vpop.f32.mrf.mxu0
        %v1759 = vadd.f32 %v1718, %v1758
        %1760 = vmatmul.f32.gmra.mxu0 %v1289
        %v1761 = vpop.f32.mrf.mxu0
        %v1762 = vadd.f32 %v1721, %v1761
        %1763 = vmatmul.f32.gmra.mxu0 %v1290
        %v1764 = vpop.f32.mrf.mxu0
        %v1765 = vadd.f32 %v1724, %v1764
        %1766 = vmatmul.f32.gmra.mxu0 %v1291
        %v1767 = vpop.f32.mrf.mxu0
        %v1768 = vadd.f32 %v1727, %v1767
        %1769 = vmatmul.f32.gmra.mxu0 %v1292
        %v1770 = vpop.f32.mrf.mxu0
        %v1771 = vadd.f32 %v1730, %v1770
        %1772 = vdwg.mxu0
        %1773 = vmatpush.msra.mxu0 %v1444
        %1774 = vmatpush.msra.mxu0 %v1443
        %1775 = vmatpush.msra.mxu0 %v1442
        %1776 = vmatpush.msra.mxu0 %v1441
        %1777 = vmatpush.msra.mxu0 %v1440
        %1778 = vmatpush.msra.mxu0 %v1439
        %1779 = vmatpush.msra.mxu0 %v1438
        %1780 = vmatpush.msra.mxu0 %v1437
        %1781 = vmatpush.msra.mxu0 %v1436
        %1782 = vmatpush.msra.mxu0 %v1435
        %1783 = vmatpush.msra.mxu0 %v1434
        %1784 = vmatpush.msra.mxu0 %v1433
        %1785 = vmatpush.msra.mxu0 %v1432
        %1786 = vmatpush.msra.mxu0 %v1431
        %1787 = vmatpush.msra.mxu0 %v1430
        %1788 = vmatpush.msra.mxu0 %v1429
        %1789 = vmatmul.f32.gmra.mxu0 %v1293
        %v1790 = vpop.f32.mrf.mxu0
        %v1791 = vadd.f32 %v1750, %v1790
        %1792 = vmatmul.f32.gmra.mxu0 %v1294
        %v1793 = vpop.f32.mrf.mxu0
        %v1794 = vadd.f32 %v1753, %v1793
        %1795 = vmatmul.f32.gmra.mxu0 %v1295
        %v1796 = vpop.f32.mrf.mxu0
        %v1797 = vadd.f32 %v1756, %v1796
        %1798 = vmatmul.f32.gmra.mxu0 %v1296
        %v1799 = vpop.f32.mrf.mxu0
        %v1800 = vadd.f32 %v1759, %v1799
        %1801 = vmatmul.f32.gmra.mxu0 %v1297
        %v1802 = vpop.f32.mrf.mxu0
        %v1803 = vadd.f32 %v1762, %v1802
        %1804 = vmatmul.f32.gmra.mxu0 %v1298
        %v1805 = vpop.f32.mrf.mxu0
        %v1806 = vadd.f32 %v1765, %v1805
        %1807 = vmatmul.f32.gmra.mxu0 %v1299
        %v1808 = vpop.f32.mrf.mxu0
        %v1809 = vadd.f32 %v1768, %v1808
        %1810 = vmatmul.f32.gmra.mxu0 %v1300
        %v1811 = vpop.f32.mrf.mxu0
        %v1812 = vadd.f32 %v1771, %v1811
        %1813 = vdwg.mxu0
        %v1814 = vld [vmem:[%s5] sm:$0x1]
        %v1816 = vperm.slane %v1814, 0
        %v1818 = vmul.f32 %v1791, %v1816
        %v1819 = vmul.f32 %v1794, %v1816
        %v1820 = vmul.f32 %v1797, %v1816
        %v1821 = vmul.f32 %v1800, %v1816
        %v1822 = vmul.f32 %v1803, %v1816
        %v1823 = vmul.f32 %v1806, %v1816
        %v1824 = vmul.f32 %v1809, %v1816
        %v1825 = vmul.f32 %v1812, %v1816
        %v1826 = vld [vmem:[%s6] sm:$0x1]
        %v1828 = vperm.slane %v1826, 0
        %v1830 = vadd.f32 %v1818, %v1828
        %v1831 = vadd.f32 %v1819, %v1828
        %v1832 = vadd.f32 %v1820, %v1828
        %v1833 = vadd.f32 %v1821, %v1828
        %v1834 = vadd.f32 %v1822, %v1828
        %v1835 = vadd.f32 %v1823, %v1828
        %v1836 = vadd.f32 %v1824, %v1828
        %v1837 = vadd.f32 %v1825, %v1828
        %v1838 = vld [vmem:[%s574] ss:$2 sm:$0xff]
        %v1839 = vld [vmem:[%s576] ss:$2 sm:$0xff]
        %v1840 = vld [vmem:[%s578] ss:$2 sm:$0xff]
        %v1841 = vld [vmem:[%s580] ss:$2 sm:$0xff]
        %v1842 = vld [vmem:[%s582] ss:$2 sm:$0xff]
        %v1843 = vld [vmem:[%s584] ss:$2 sm:$0xff]
        %v1844 = vld [vmem:[%s586] ss:$2 sm:$0xff]
        %v1845 = vld [vmem:[%s588] ss:$2 sm:$0xff]
        %v1846 = vld [vmem:[%s7] sm:$0xff]
        %v1847 = vld [vmem:[%s7 + $0x8] sm:$0xff]
        %v1848 = vld [vmem:[%s7 + $0x10] sm:$0xff]
        %v1849 = vld [vmem:[%s7 + $0x18] sm:$0xff]
        %v1850 = vld [vmem:[%s7 + $0x20] sm:$0xff]
        %v1851 = vld [vmem:[%s7 + $0x28] sm:$0xff]
        %v1852 = vld [vmem:[%s7 + $0x30] sm:$0xff]
        %v1853 = vld [vmem:[%s7 + $0x38] sm:$0xff]
        %v1854 = vld [vmem:[%s7 + $0x40] sm:$0xff]
        %v1855 = vld [vmem:[%s7 + $0x48] sm:$0xff]
        %v1856 = vld [vmem:[%s7 + $0x50] sm:$0xff]
        %v1857 = vld [vmem:[%s7 + $0x58] sm:$0xff]
        %v1858 = vld [vmem:[%s7 + $0x60] sm:$0xff]
        %v1859 = vld [vmem:[%s7 + $0x68] sm:$0xff]
        %v1860 = vld [vmem:[%s7 + $0x70] sm:$0xff]
        %v1861 = vld [vmem:[%s7 + $0x78] sm:$0xff]
        %1862 = vmatpush.msra.mxu0 %v1861
        %1863 = vmatpush.msra.mxu0 %v1860
        %1864 = vmatpush.msra.mxu0 %v1859
        %1865 = vmatpush.msra.mxu0 %v1858
        %1866 = vmatpush.msra.mxu0 %v1857
        %1867 = vmatpush.msra.mxu0 %v1856
        %1868 = vmatpush.msra.mxu0 %v1855
        %1869 = vmatpush.msra.mxu0 %v1854
        %1870 = vmatpush.msra.mxu0 %v1853
        %1871 = vmatpush.msra.mxu0 %v1852
        %1872 = vmatpush.msra.mxu0 %v1851
        %1873 = vmatpush.msra.mxu0 %v1850
        %1874 = vmatpush.msra.mxu0 %v1849
        %1875 = vmatpush.msra.mxu0 %v1848
        %1876 = vmatpush.msra.mxu0 %v1847
        %1877 = vmatpush.msra.mxu0 %v1846
        %1878 = vmatmul.f32.gmra.mxu0 %v1838
        %v1879 = vpop.f32.mrf.mxu0
        %v1880 = vadd.f32 0.0, %v1879
        %1881 = vmatmul.f32.gmra.mxu0 %v1839
        %v1882 = vpop.f32.mrf.mxu0
        %v1883 = vadd.f32 0.0, %v1882
        %1884 = vmatmul.f32.gmra.mxu0 %v1840
        %v1885 = vpop.f32.mrf.mxu0
        %v1886 = vadd.f32 0.0, %v1885
        %1887 = vmatmul.f32.gmra.mxu0 %v1841
        %v1888 = vpop.f32.mrf.mxu0
        %v1889 = vadd.f32 0.0, %v1888
        %1890 = vmatmul.f32.gmra.mxu0 %v1842
        %v1891 = vpop.f32.mrf.mxu0
        %v1892 = vadd.f32 0.0, %v1891
        %1893 = vmatmul.f32.gmra.mxu0 %v1843
        %v1894 = vpop.f32.mrf.mxu0
        %v1895 = vadd.f32 0.0, %v1894
        %1896 = vmatmul.f32.gmra.mxu0 %v1844
        %v1897 = vpop.f32.mrf.mxu0
        %v1898 = vadd.f32 0.0, %v1897
        %1899 = vmatmul.f32.gmra.mxu0 %v1845
        %v1900 = vpop.f32.mrf.mxu0
        %v1901 = vadd.f32 0.0, %v1900
        %1902 = vdwg.mxu0
        %v1903 = vld [vmem:[%s8] sm:$0x1]
        %v1905 = vperm.slane %v1903, 0
        %v1907 = vmul.f32 %v1880, %v1905
        %v1908 = vmul.f32 %v1883, %v1905
        %v1909 = vmul.f32 %v1886, %v1905
        %v1910 = vmul.f32 %v1889, %v1905
        %v1911 = vmul.f32 %v1892, %v1905
        %v1912 = vmul.f32 %v1895, %v1905
        %v1913 = vmul.f32 %v1898, %v1905
        %v1914 = vmul.f32 %v1901, %v1905
        %v1915 = vld [vmem:[%s9] sm:$0x1]
        %v1917 = vperm.slane %v1915, 0
        %v1919 = vadd.f32 %v1907, %v1917
        %v1920 = vadd.f32 %v1908, %v1917
        %v1921 = vadd.f32 %v1909, %v1917
        %v1922 = vadd.f32 %v1910, %v1917
        %v1923 = vadd.f32 %v1911, %v1917
        %v1924 = vadd.f32 %v1912, %v1917
        %v1925 = vadd.f32 %v1913, %v1917
        %v1926 = vadd.f32 %v1914, %v1917
        %v1927 = vadd.f32 %v1830, %v1919
        %v1928 = vadd.f32 %v1831, %v1920
        %v1929 = vadd.f32 %v1832, %v1921
        %v1930 = vadd.f32 %v1833, %v1922
        %v1931 = vadd.f32 %v1834, %v1923
        %v1932 = vadd.f32 %v1835, %v1924
        %v1933 = vadd.f32 %v1836, %v1925
        %v1934 = vadd.f32 %v1837, %v1926
        %v1935 = vmax.f32 %v1927, 0.0
        %v1936 = vmax.f32 %v1928, 0.0
        %v1937 = vmax.f32 %v1929, 0.0
        %v1938 = vmax.f32 %v1930, 0.0
        %v1939 = vmax.f32 %v1931, 0.0
        %v1940 = vmax.f32 %v1932, 0.0
        %v1941 = vmax.f32 %v1933, 0.0
        %v1942 = vmax.f32 %v1934, 0.0
        %1943 = vst [vmem:[%s386] sm:$0xff] %v1935
        %1944 = vst [vmem:[%s386 + $0x8] sm:$0xff] %v1936
        %1945 = vst [vmem:[%s386 + $0x10] sm:$0xff] %v1937
        %1946 = vst [vmem:[%s386 + $0x18] sm:$0xff] %v1938
        %1947 = vst [vmem:[%s386 + $0x20] sm:$0xff] %v1939
        %1948 = vst [vmem:[%s386 + $0x28] sm:$0xff] %v1940
        %1949 = vst [vmem:[%s386 + $0x30] sm:$0xff] %v1941
        %1950 = vst [vmem:[%s386 + $0x38] sm:$0xff] %v1942
        %s1951 = sand.u32 %s249, 1
        %s1952 = scalar_lea.sflag [#allocation6], %s1951
        %s1953 = sand.u32 %s249, 1
        %s1954 = smul.addr %s1953, 64
        %s1955 = scalar_lea.vmem [#allocation9], %s1954
        // Predicated region
        $region69: #{tpu_custom_call.1} parent=59 // pred_check
          %p1956 = pneg %p259
        $region70: #{tpu_custom_call.1} parent=59 // pred_check_branch
          %1958 = sbr.rel (%p1956) target = $region72
        $region71: #{tpu_custom_call.1} parent=59 // pred_region
          %1960 = vsyncadd %s1952, 0
          %s1961 = smul.addr %s26, 8
          %s1962 = smul.addr %s1961, 8
          %s1963 = scalar_lea.hbm %s10, %s1962
          %s1964 = sshll.u32 %s1955, 4
          %s1965 = int_to_ptr.vmem [resolvable:$true] %s1964
          %s1966 = sshll.u32 %s1963, 4
          %s1967 = int_to_ptr.hbm [resolvable:$true] %s1966
          %1972 = dma.vmem_to_hbm [thread:$0]  %s1965, 1024, %s1967, %s1952, 128, 128, 8
        $region72: #{tpu_custom_call.1} parent=59 // pred_fallthru
          _
      $region60: #{tpu_custom_call.1} parent=5 // pred_fallthru
        _
      %p1973 = scmp.le.s32.totalorder 2, %s21
      // Predicated region
      $region73: #{tpu_custom_call.1} parent=5 // pred_check
        %p1974 = pneg %p1973
      $region74: #{tpu_custom_call.1} parent=5 // pred_check_branch
        %1976 = sbr.rel (%p1974) target = $region76
      $region75: #{tpu_custom_call.1} parent=5 // pred_region
        %s1977 = ssub.s32 %s21, 2
        // Predicated region
        $region77: #{tpu_custom_call.1} parent=75 // pred_check
          %p1978 = pneg %p265
        $region78: #{tpu_custom_call.1} parent=75 // pred_check_branch
          %1980 = sbr.rel (%p1978) target = $region80
        $region79: #{tpu_custom_call.1} parent=75 // pred_region
          %s1981 = sand.u32 %s250, 1
          %s1982 = scalar_lea.sflag [#allocation6], %s1981
          %s1983 = sand.u32 %s250, 1
          %s1984 = smul.addr %s1983, 64
          %s1985 = scalar_lea.vmem [#allocation9], %s1984
          %1987 = dma.done %s1982, 1024
        $region80: #{tpu_custom_call.1} parent=75 // pred_fallthru
          _
      $region76: #{tpu_custom_call.1} parent=5 // pred_fallthru
        _
    $region6: #{tpu_custom_call.1} parent=1 // loop_footer
      %s25 = sadd.s32 1, %s21
    $region7: #{tpu_custom_call.1} parent=1 // loop_footer_branch
      %20 = sbr.rel target = $region3
    $region8: #{tpu_custom_call.1} parent=1 // loop_exit
      _
    %1988 = vsyncpa [#allocation5], 1
    %s1989 = scalar_lea.sflag [#allocation5], 1
    %1990 = vsyncpa %s1989, 1
    %1991 = vsyncpa [#allocation8], 1
    %1992 = vsyncpa [#allocation6], 1
    %s1993 = scalar_lea.sflag [#allocation6], 1
    %1994 = vsyncpa %s1993, 1

</llo_original>
